<compile_context>
chip_gen: v6e
topology: v6e:2x2x1
jax: 0.10.0
libtpu: 0.0.40
codegen_flags: <defaults>
</compile_context>

<pallas_src>
import functools
import math

import jax
import jax.numpy as jnp
from jax import lax
from jax.experimental import pallas as pl
from jax.experimental.pallas import tpu as pltpu


EPS = 1e-5                                              # nn.LayerNorm default
MASK_VALUE = -0.7 * float(jnp.finfo(jnp.float32).max)   # finite causal mask value


# ----------------------------------------------------------------------------
# small helpers
# ----------------------------------------------------------------------------
def _layer_norm(v, w, b):
    mu = jnp.mean(v, axis=-1, keepdims=True)
    var = jnp.mean(jnp.square(v - mu), axis=-1, keepdims=True)
    return (v - mu) * lax.rsqrt(var + EPS) * w + b


def _new_gelu(x):
    # GPT-2 tanh approximation of GELU (EUP tanh).
    c = math.sqrt(2.0 / math.pi)
    return 0.5 * x * (1.0 + jnp.tanh(c * (x + 0.044715 * x * x * x)))


@functools.lru_cache(maxsize=None)
def _vmem_limit_bytes():
    """Per-chip scoped-VMEM budget: ~3/4 of physical, capped at 96 MiB.

    v5e/v6e (128 MiB) -> 96 MiB; v7x (64 MiB) -> 48 MiB.  Falls back to a safe
    48 MiB if the hardware query is unavailable.
    """
    try:
        cap = int(pltpu.get_tpu_info().vmem_capacity_bytes)
        return int(min(cap * 3 // 4, 96 * 1024 * 1024))
    except Exception:
        return 48 * 1024 * 1024


@functools.lru_cache(maxsize=None)
def _single_buffer_supported():
    """Probe whether BlockSpec(pipeline_mode=pl.Buffered(1)) works on this backend."""
    if not hasattr(pl, "Buffered"):
        return False

    def probe_kernel(w_ref, x_ref, o_ref):
        o_ref[...] = x_ref[...] + w_ref[...]

    try:
        w = jnp.ones((8, 128), jnp.float32)
        xp = jnp.ones((16, 128), jnp.float32)
        fn = pl.pallas_call(
            probe_kernel,
            out_shape=jax.ShapeDtypeStruct((16, 128), jnp.float32),
            grid=(2,),
            in_specs=[
                pl.BlockSpec((8, 128), lambda i: (0, 0),
                             pipeline_mode=pl.Buffered(1)),
                pl.BlockSpec((8, 128), lambda i: (i, 0)),
            ],
            out_specs=pl.BlockSpec((8, 128), lambda i: (i, 0)),
        )
        res = jax.block_until_ready(fn(w, xp))
        return bool(jnp.allclose(res, 2.0))
    except Exception:
        return False


def _const_spec(block_shape, index_map):
    """BlockSpec for grid-invariant operands; single-buffered when supported."""
    if _single_buffer_supported():
        return pl.BlockSpec(block_shape, index_map, pipeline_mode=pl.Buffered(1))
    return pl.BlockSpec(block_shape, index_map)


# ----------------------------------------------------------------------------
# kernel A: LayerNorm1 + fused QKV projection (lane-dense (B, T, C) outputs)
# ----------------------------------------------------------------------------
def _ln_qkv_kernel(x_ref, ln1w_ref, ln1b_ref, wqkv_ref, bqkv_ref,
                   q_ref, k_ref, v_ref):
    x = x_ref[0].astype(jnp.float32)                 # (bt, C)
    C = x.shape[-1]

    h = _layer_norm(x, ln1w_ref[0], ln1b_ref[0]).astype(wqkv_ref.dtype)
    # NOTE: for very large C (v7x 64 MiB VMEM) block the 3C output dim of this
    # matmul with an extra grid axis; at demo C the full (C, 3C) weight is tiny.
    qkv = jnp.dot(h, wqkv_ref[...],
                  preferred_element_type=jnp.float32) + bqkv_ref[0]   # (bt, 3C)

    # Aligned 128-lane slices -> unmasked, lane-dense stores.
    q_ref[0] = qkv[:, 0 * C:1 * C].astype(q_ref.dtype)
    k_ref[0] = qkv[:, 1 * C:2 * C].astype(k_ref.dtype)
    v_ref[0] = qkv[:, 2 * C:3 * C].astype(v_ref.dtype)


# ----------------------------------------------------------------------------
# kernel B: flash attention + fused output projection + first residual
# ----------------------------------------------------------------------------
def _attn_kernel(x_ref, q_ref, k_ref, v_ref, wo_ref, bo_ref, o_ref,
                 m_scr, l_scr, acc_scr, *,
                 n_head, head_dim, causal, sm_scale, block_q, block_k):
    qi = pl.program_id(1)
    ki = pl.program_id(2)
    hd = head_dim

    @pl.when(ki == 0)
    def _init():
        m_scr[...] = jnp.full_like(m_scr, -jnp.inf)
        l_scr[...] = jnp.zeros_like(l_scr)
        acc_scr[...] = jnp.zeros_like(acc_scr)

    def _compute():
        # sm_scale folded into q once per tile (cheaper than scaling (bq,bk,H) scores)
        q = q_ref[0] * sm_scale                        # (bq, C), matmul dtype
        k = k_ref[0]                                   # (bk, C)
        v = v_ref[0]                                   # (bk, C)

        if causal:
            q_pos = qi * block_q + lax.broadcasted_iota(
                jnp.int32, (block_q, block_k), 0)
            k_pos = ki * block_k + lax.broadcasted_iota(
                jnp.int32, (block_q, block_k), 1)
            allowed = k_pos <= q_pos                   # shared across heads

        # Heads processed as a static (unrolled) loop over aligned lane slices
        # of the lane-dense (block, C) tiles; per-head stats/acc live in scratch.
        for h in range(n_head):
            sl = slice(h * hd, (h + 1) * hd)
            s = lax.dot_general(q[:, sl], k[:, sl],
                                (((1,), (1,)), ((), ())),
                                preferred_element_type=jnp.float32)    # (bq, bk)
            if causal:
                s = jnp.where(allowed, s, MASK_VALUE)

            m_prev = m_scr[h]                                          # (bq, 1)
            m_new = jnp.maximum(m_prev, jnp.max(s, axis=-1, keepdims=True))
            alpha = jnp.exp(m_prev - m_new)
            p = jnp.exp(s - m_new)
            l_scr[h] = alpha * l_scr[h] + jnp.sum(p, axis=-1, keepdims=True)
            acc_scr[h] = alpha * acc_scr[h] + jnp.dot(
                p.astype(v.dtype), v[:, sl],
                preferred_element_type=jnp.float32)
            m_scr[h] = m_new

    if causal:
        # Skip kv tiles strictly above the causal diagonal.  Their K/V DMAs are
        # also suppressed by the clamped index_map in the wrapper (no HBM traffic).
        pl.when(ki * block_k <= qi * block_q + (block_q - 1))(_compute)
    else:
        _compute()

    @pl.when(ki == pl.num_programs(2) - 1)
    def _finalize():
        # Fused output projection + first residual; lane-dense (bq, C) store.
        out = x_ref[0].astype(jnp.float32) + bo_ref[0]
        for h in range(n_head):
            inv_l = pl.reciprocal(l_scr[h], approx=False)   # exact (strict parity)
            y_h = (acc_scr[h] * inv_l).astype(wo_ref.dtype)
            out = out + jnp.dot(y_h, wo_ref[h],
                                preferred_element_type=jnp.float32)
        o_ref[0] = out.astype(o_ref.dtype)


# ----------------------------------------------------------------------------
# kernel C: LayerNorm2 + MLP (4C dim blocked) + second residual
# ----------------------------------------------------------------------------
def _mlp_kernel(x1_ref, ln2w_ref, ln2b_ref, wfc_ref, bfc_ref, wpr_ref, bpr_ref,
                o_ref, h2_scr, acc_scr):
    kf = pl.program_id(2)

    @pl.when(kf == 0)
    def _init():
        x1 = x1_ref[0].astype(jnp.float32)             # (bt, C)
        h2_scr[...] = _layer_norm(x1, ln2w_ref[0], ln2b_ref[0]).astype(h2_scr.dtype)
        acc_scr[...] = jnp.zeros_like(acc_scr)

    # MLP, blocked over the 4C inner dimension (grid axis kf, f32 accumulator).
    f = jnp.dot(h2_scr[...], wfc_ref[...],
                preferred_element_type=jnp.float32) + bfc_ref[0]
    g = _new_gelu(f)                                   # f32 elementwise
    acc_scr[...] += jnp.dot(g.astype(wpr_ref.dtype), wpr_ref[...],
                            preferred_element_type=jnp.float32)

    @pl.when(kf == pl.num_programs(2) - 1)
    def _finalize():
        o_ref[0] = (x1_ref[0].astype(jnp.float32) + acc_scr[...]
                    + bpr_ref[0]).astype(o_ref.dtype)


# ----------------------------------------------------------------------------
# wrapper
# ----------------------------------------------------------------------------
def block_forward(x, params, *, n_head, causal,
                  block_q=128, block_k=256, block_t=256, block_ff=512,
                  matmul_dtype=jnp.bfloat16):
    (ln1w, ln1b, wqkv, bqkv, wo, bo, ln2w, ln2b, wfc, bfc, wpr, bpr) = params
    B, T, C = x.shape
    assert C % n_head == 0
    hd = C // n_head
    d_ff = 4 * C

    block_q = min(block_q, T)
    block_k = min(block_k, T)
    block_t = min(block_t, T)
    block_ff = min(block_ff, d_ff)
    assert T % block_q == 0 and T % block_k == 0 and T % block_t == 0
    assert d_ff % block_ff == 0

    nq, nk = T // block_q, T // block_k
    nt, nf = T // block_t, d_ff // block_ff

    mm = matmul_dtype
    mm_bytes = jnp.dtype(mm).itemsize
    x_bytes = jnp.dtype(x.dtype).itemsize
    wqkv_c = wqkv.astype(mm)
    wo_heads = wo.reshape(n_head, hd, C).astype(mm)    # per-head projection weights
    wfc_c = wfc.astype(mm)
    wpr_c = wpr.astype(mm)

    vmem_limit = _vmem_limit_bytes()

    # ---- kernel A: LN1 + fused QKV (lane-dense q/k/v) ------------------------
    q, k, v = pl.pallas_call(
        _ln_qkv_kernel,
        out_shape=[jax.ShapeDtypeStruct((B, T, C), mm)] * 3,
        grid=(B, nt),
        in_specs=[
            pl.BlockSpec((1, block_t, C), lambda b, ti: (b, ti, 0)),
            _const_spec((1, C), lambda b, ti: (0, 0)),
            _const_spec((1, C), lambda b, ti: (0, 0)),
            _const_spec((C, 3 * C), lambda b, ti: (0, 0)),
            _const_spec((1, 3 * C), lambda b, ti: (0, 0)),
        ],
        out_specs=[pl.BlockSpec((1, block_t, C), lambda b, ti: (b, ti, 0))] * 3,
        compiler_params=pltpu.CompilerParams(
            dimension_semantics=("parallel", "parallel"),
            vmem_limit_bytes=vmem_limit),
        cost_estimate=pl.CostEstimate(
            flops=int(2 * B * T * C * 3 * C),
            transcendentals=int(B * T),
            bytes_accessed=int(B * T * C * x_bytes
                               + 3 * B * T * C * mm_bytes
                               + (C * 3 * C + 3 * C) * mm_bytes)),
    )(x, ln1w, ln1b, wqkv_c, bqkv)

    # ---- kernel B: flash attention + fused proj + residual -------------------
    sm_scale = 1.0 / math.sqrt(hd)

    if causal:
        # Clamp kv tile index to the last tile needed for this q tile: skipped
        # upper-triangle steps request an already-resident block => no DMA.
        def kv_map(b, qi, ki):
            last = (qi * block_q + (block_q - 1)) // block_k
            return (b, jnp.minimum(ki, last), 0)
        kv_passes = max(1, (nq + 1) // 2)
    else:
        def kv_map(b, qi, ki):
            return (b, ki, 0)
        kv_passes = nq

    x1 = pl.pallas_call(
        functools.partial(_attn_kernel, n_head=n_head, head_dim=hd,
                          causal=causal, sm_scale=sm_scale,
                          block_q=block_q, block_k=block_k),
        out_shape=jax.ShapeDtypeStruct((B, T, C), x.dtype),
        grid=(B, nq, nk),
        in_specs=[
            pl.BlockSpec((1, block_q, C), lambda b, qi, ki: (b, qi, 0)),   # x
            pl.BlockSpec((1, block_q, C), lambda b, qi, ki: (b, qi, 0)),   # q
            pl.BlockSpec((1, block_k, C), kv_map),                         # k
            pl.BlockSpec((1, block_k, C), kv_map),                         # v
            _const_spec((n_head, hd, C), lambda b, qi, ki: (0, 0, 0)),     # Wo
            _const_spec((1, C), lambda b, qi, ki: (0, 0)),                 # bo
        ],
        out_specs=pl.BlockSpec((1, block_q, C), lambda b, qi, ki: (b, qi, 0)),
        scratch_shapes=[
            pltpu.VMEM((n_head, block_q, 1), jnp.float32),    # running max
            pltpu.VMEM((n_head, block_q, 1), jnp.float32),    # running sum
            pltpu.VMEM((n_head, block_q, hd), jnp.float32),   # output accumulator
        ],
        compiler_params=pltpu.CompilerParams(
            dimension_semantics=("parallel", "parallel", "arbitrary"),
            vmem_limit_bytes=vmem_limit),
        cost_estimate=pl.CostEstimate(
            flops=int(4 * B * n_head * T * T * hd + 2 * B * T * C * C),
            transcendentals=int(B * n_head * T * T),
            bytes_accessed=int(2 * B * T * C * x_bytes            # x in, x1 out
                               + B * T * C * mm_bytes             # q (read once)
                               + 2 * B * T * C * mm_bytes * kv_passes   # k, v re-read
                               + (C * C + C) * mm_bytes)),        # Wo, bo
    )(x, q, k, v, wo_heads, bo)

    # ---- kernel C: LN2 + MLP + residual ---------------------------------------
    out = pl.pallas_call(
        _mlp_kernel,
        out_shape=jax.ShapeDtypeStruct((B, T, C), x.dtype),
        grid=(B, nt, nf),
        in_specs=[
            pl.BlockSpec((1, block_t, C), lambda b, ti, kf: (b, ti, 0)),
            _const_spec((1, C), lambda b, ti, kf: (0, 0)),
            _const_spec((1, C), lambda b, ti, kf: (0, 0)),
            pl.BlockSpec((C, block_ff), lambda b, ti, kf: (0, kf)),
            pl.BlockSpec((1, block_ff), lambda b, ti, kf: (0, kf)),
            pl.BlockSpec((block_ff, C), lambda b, ti, kf: (kf, 0)),
            _const_spec((1, C), lambda b, ti, kf: (0, 0)),
        ],
        out_specs=pl.BlockSpec((1, block_t, C), lambda b, ti, kf: (b, ti, 0)),
        scratch_shapes=[
            pltpu.VMEM((block_t, C), mm),            # LN2 output (matmul dtype)
            pltpu.VMEM((block_t, C), jnp.float32),   # MLP accumulator
        ],
        compiler_params=pltpu.CompilerParams(
            dimension_semantics=("parallel", "parallel", "arbitrary"),
            vmem_limit_bytes=vmem_limit),
        cost_estimate=pl.CostEstimate(
            flops=int(4 * B * T * C * d_ff),
            transcendentals=int(B * T * d_ff),
            bytes_accessed=int(2 * B * T * C * x_bytes
                               + 2 * C * d_ff * mm_bytes * B * nt   # Wfc/Wpr streamed
                               + (d_ff + C) * 4)),
    )(x1, ln2w, ln2b, wfc_c, bfc, wpr_c, bpr)

    return out


# ----------------------------------------------------------------------------
# parameters / pure-JAX reference
# ----------------------------------------------------------------------------
def init_params(key, dim):
    """Synthetic parameters (shapes match the PyTorch module, bias=True).

    Linear weights are stored transposed (in_features, out_features) so the
    kernel computes y = x @ W + b (== PyTorch x @ W_pt.T + b).  Biases / LN
    params are (1, n) so every in-kernel operand is >= 2-D.
    """
    ks = jax.random.split(key, 8)
    s = 0.02
    ln1w = jnp.ones((1, dim), jnp.float32)
    ln1b = jnp.zeros((1, dim), jnp.float32)
    wqkv = s * jax.random.normal(ks[0], (dim, 3 * dim), jnp.float32)
    bqkv = s * jax.random.normal(ks[1], (1, 3 * dim), jnp.float32)
    wo = s * jax.random.normal(ks[2], (dim, dim), jnp.float32)
    bo = s * jax.random.normal(ks[3], (1, dim), jnp.float32)
    ln2w = jnp.ones((1, dim), jnp.float32)
    ln2b = jnp.zeros((1, dim), jnp.float32)
    wfc = s * jax.random.normal(ks[4], (dim, 4 * dim), jnp.float32)
    bfc = s * jax.random.normal(ks[5], (1, 4 * dim), jnp.float32)
    wpr = s * jax.random.normal(ks[6], (4 * dim, dim), jnp.float32)
    bpr = s * jax.random.normal(ks[7], (1, dim), jnp.float32)
    return (ln1w, ln1b, wqkv, bqkv, wo, bo, ln2w, ln2b, wfc, bfc, wpr, bpr)


def ref_block(x, params, *, n_head, causal):
    """Pure-JAX reference mirroring the PyTorch forward at eval time."""
    (ln1w, ln1b, wqkv, bqkv, wo, bo, ln2w, ln2b, wfc, bfc, wpr, bpr) = params
    B, T, C = x.shape
    hd = C // n_head

    def ln(v, w, b):
        mu = v.mean(-1, keepdims=True)
        var = ((v - mu) ** 2).mean(-1, keepdims=True)
        return (v - mu) / jnp.sqrt(var + EPS) * w[0] + b[0]

    h = ln(x, ln1w, ln1b)
    qkv = h @ wqkv + bqkv[0]
    q, k, v = jnp.split(qkv, 3, axis=-1)
    q = q.reshape(B, T, n_head, hd).transpose(0, 2, 1, 3)
    k = k.reshape(B, T, n_head, hd).transpose(0, 2, 1, 3)
    v = v.reshape(B, T, n_head, hd).transpose(0, 2, 1, 3)
    s = jnp.einsum("bhqd,bhkd->bhqk", q, k) / math.sqrt(hd)
    if causal:
        mask = jnp.tril(jnp.ones((T, T), bool))
        s = jnp.where(mask, s, -jnp.inf)
    p = jax.nn.softmax(s, axis=-1)
    y = jnp.einsum("bhqk,bhkd->bhqd", p, v).transpose(0, 2, 1, 3).reshape(B, T, C)
    x1 = x + (y @ wo + bo[0])
    h2 = ln(x1, ln2w, ln2b)
    f = h2 @ wfc + bfc[0]
    g = 0.5 * f * (1.0 + jnp.tanh(math.sqrt(2.0 / math.pi) * (f + 0.044715 * f ** 3)))
    return x1 + (g @ wpr + bpr[0])


# ----------------------------------------------------------------------------
# demo / correctness check
# ----------------------------------------------------------------------------
if __name__ == "__main__":
    B, T, C, n_head = 2, 256, 128, 4
    causal = True

    key = jax.random.PRNGKey(0)
    kx, kp = jax.random.split(key)
    x = jax.random.normal(kx, (B, T, C), jnp.float32)
    params = init_params(kp, C)

    ref = ref_block(x, params, n_head=n_head, causal=causal)

    # f32 matmul path with small tiles: exercises multi-tile flash attention,
    # causal tile skipping + DMA clamp, and the blocked MLP reduction.
    out_f32 = jax.block_until_ready(
        block_forward(x, params, n_head=n_head, causal=causal,
                      block_q=64, block_k=64, block_t=128, block_ff=256,
                      matmul_dtype=jnp.float32))
    assert out_f32.shape == (B, T, C)
    err_f32 = float(jnp.max(jnp.abs(out_f32 - ref)))
    assert err_f32 < 2e-3, f"f32 kernel mismatch vs reference: {err_f32}"

    # bf16 matmul path with default (larger) tiles: deployment mode.
    out_bf16 = jax.block_until_ready(
        block_forward(x, params, n_head=n_head, causal=causal,
                      matmul_dtype=jnp.bfloat16))
    err_bf16 = float(jnp.max(jnp.abs(out_bf16 - ref)))
    assert err_bf16 < 3e-2, f"bf16 kernel mismatch vs reference: {err_bf16}"

    print("KERNEL_OK")
</pallas_src>

<mosaic_0001>
module attributes {stable_mosaic.version = 11 : i64} {
  func.func @probe_kernel(%arg0: i32, %arg1: memref<8x128xf32, #tpu.memory_space<vmem>>, %arg2: memref<8x128xf32, #tpu.memory_space<vmem>>, %arg3: memref<8x128xf32, #tpu.memory_space<vmem>>) attributes {dimension_semantics = [#tpu.dimension_semantics<arbitrary>], iteration_bounds = array<i64: 2>, scalar_prefetch = 0 : i64, scratch_operands = 0 : i64, tpu.core_type = #tpu.core_type<tc>, window_params = [{pipeline_mode = #tpu.pipeline_mode<synchronous>, transform_indices = @transform_0, window_bounds = array<i64: 8, 128>}, {transform_indices = @transform_1, window_bounds = array<i64: 8, 128>}, {transform_indices = @transform_2, window_bounds = array<i64: 8, 128>}]} {
    %c0 = arith.constant 0 : index
    %c0_0 = arith.constant 0 : index
    %0 = vector.load %arg2[%c0, %c0_0] : memref<8x128xf32, #tpu.memory_space<vmem>>, vector<8x128xf32>
    %c0_1 = arith.constant 0 : index
    %c0_2 = arith.constant 0 : index
    %1 = vector.load %arg1[%c0_1, %c0_2] : memref<8x128xf32, #tpu.memory_space<vmem>>, vector<8x128xf32>
    %2 = arith.addf %0, %1 : vector<8x128xf32>
    %c0_3 = arith.constant 0 : index
    %c0_4 = arith.constant 0 : index
    %3 = vector.load %arg3[%c0_3, %c0_4] : memref<8x128xf32, #tpu.memory_space<vmem>>, vector<8x128xf32>
    tpu.vector_store %arg3[%c0_3, %c0_4], %2 {strides = array<i32>} : memref<8x128xf32, #tpu.memory_space<vmem>>, vector<8x128xf32>,
    return
  }
  func.func @transform_0(%arg0: i32) -> (i32, i32) {
    %c0_i32 = arith.constant 0 : i32
    %c0_i32_0 = arith.constant 0 : i32
    %c0_i32_1 = arith.constant 0 : i32
    return %c0_i32, %c0_i32_0 : i32, i32
  }
  func.func @transform_1(%arg0: i32) -> (i32, i32) {
    %c0_i32 = arith.constant 0 : i32
    %c0_i32_0 = arith.constant 0 : i32
    return %arg0, %c0_i32 : i32, i32
  }
  func.func @transform_2(%arg0: i32) -> (i32, i32) {
    %c0_i32 = arith.constant 0 : i32
    %c0_i32_0 = arith.constant 0 : i32
    return %arg0, %c0_i32 : i32, i32
  }
}

module attributes {stable_mosaic.version = 11 : i64} {
  func.func @_ln_qkv_kernel(%arg0: i32, %arg1: i32, %arg2: memref<1x128x128xf32, #tpu.memory_space<vmem>>, %arg3: memref<1x128xf32, #tpu.memory_space<vmem>>, %arg4: memref<1x128xf32, #tpu.memory_space<vmem>>, %arg5: memref<128x384xf32, #tpu.memory_space<vmem>>, %arg6: memref<1x384xf32, #tpu.memory_space<vmem>>, %arg7: memref<1x128x128xf32, #tpu.memory_space<vmem>>, %arg8: memref<1x128x128xf32, #tpu.memory_space<vmem>>, %arg9: memref<1x128x128xf32, #tpu.memory_space<vmem>>) attributes {dimension_semantics = [#tpu.dimension_semantics<parallel>, #tpu.dimension_semantics<parallel>], iteration_bounds = array<i64: 2, 2>, scalar_prefetch = 0 : i64, scratch_operands = 0 : i64, tpu.core_type = #tpu.core_type<tc>, window_params = [{transform_indices = @transform_0, window_bounds = array<i64: 1, 128, 128>}, {pipeline_mode = #tpu.pipeline_mode<synchronous>, transform_indices = @transform_1, window_bounds = array<i64: 1, 128>}, {pipeline_mode = #tpu.pipeline_mode<synchronous>, transform_indices = @transform_2, window_bounds = array<i64: 1, 128>}, {pipeline_mode = #tpu.pipeline_mode<synchronous>, transform_indices = @transform_3, window_bounds = array<i64: 128, 384>}, {pipeline_mode = #tpu.pipeline_mode<synchronous>, transform_indices = @transform_4, window_bounds = array<i64: 1, 384>}, {transform_indices = @transform_5, window_bounds = array<i64: 1, 128, 128>}, {transform_indices = @transform_6, window_bounds = array<i64: 1, 128, 128>}, {transform_indices = @transform_7, window_bounds = array<i64: 1, 128, 128>}]} {
    %c0 = arith.constant 0 : index
    %c0_0 = arith.constant 0 : index
    %c0_1 = arith.constant 0 : index
    %0 = vector.load %arg2[%c0, %c0_0, %c0_1] : memref<1x128x128xf32, #tpu.memory_space<vmem>>, vector<1x128x128xf32>
    %1 = vector.shape_cast %0 : vector<1x128x128xf32> to vector<128x128xf32>
    %c0_2 = arith.constant 0 : index
    %c0_3 = arith.constant 0 : index
    %2 = vector.load %arg3[%c0_2, %c0_3] : memref<1x128xf32, #tpu.memory_space<vmem>>, vector<1x128xf32>
    %3 = vector.shape_cast %2 : vector<1x128xf32> to vector<128xf32>
    %c0_4 = arith.constant 0 : index
    %c0_5 = arith.constant 0 : index
    %4 = vector.load %arg4[%c0_4, %c0_5] : memref<1x128xf32, #tpu.memory_space<vmem>>, vector<1x128xf32>
    %5 = vector.shape_cast %4 : vector<1x128xf32> to vector<128xf32>
    %cst = arith.constant dense<0.000000e+00> : vector<128xf32>
    %6 = vector.multi_reduction <add>, %1, %cst [1] : vector<128x128xf32> to vector<128xf32>
    %7 = vector.shape_cast %6 : vector<128xf32> to vector<128x1xf32>
    %cst_6 = arith.constant 1.280000e+02 : f32
    %8 = vector.broadcast %cst_6 : f32 to vector<128x1xf32>
    %9 = arith.divf %7, %8 : vector<128x1xf32>
    %10 = vector.broadcast %9 : vector<128x1xf32> to vector<128x128xf32>
    %11 = arith.subf %1, %10 : vector<128x128xf32>
    %12 = arith.mulf %11, %11 : vector<128x128xf32>
    %cst_7 = arith.constant dense<0.000000e+00> : vector<128xf32>
    %13 = vector.multi_reduction <add>, %12, %cst_7 [1] : vector<128x128xf32> to vector<128xf32>
    %14 = vector.shape_cast %13 : vector<128xf32> to vector<128x1xf32>
    %cst_8 = arith.constant 1.280000e+02 : f32
    %15 = vector.broadcast %cst_8 : f32 to vector<128x1xf32>
    %16 = arith.divf %14, %15 : vector<128x1xf32>
    %17 = vector.broadcast %9 : vector<128x1xf32> to vector<128x128xf32>
    %18 = arith.subf %1, %17 : vector<128x128xf32>
    %cst_9 = arith.constant 9.99999974E-6 : f32
    %19 = vector.broadcast %cst_9 : f32 to vector<128x1xf32>
    %20 = arith.addf %16, %19 : vector<128x1xf32>
    %21 = math.rsqrt %20 : vector<128x1xf32>
    %22 = vector.broadcast %21 : vector<128x1xf32> to vector<128x128xf32>
    %23 = arith.mulf %18, %22 : vector<128x128xf32>
    %24 = vector.shape_cast %3 : vector<128xf32> to vector<1x128xf32>
    %25 = vector.broadcast %24 : vector<1x128xf32> to vector<128x128xf32>
    %26 = arith.mulf %23, %25 : vector<128x128xf32>
    %27 = vector.shape_cast %5 : vector<128xf32> to vector<1x128xf32>
    %28 = vector.broadcast %27 : vector<1x128xf32> to vector<128x128xf32>
    %29 = arith.addf %26, %28 : vector<128x128xf32>
    %c0_10 = arith.constant 0 : index
    %c0_11 = arith.constant 0 : index
    %30 = vector.load %arg5[%c0_10, %c0_11] : memref<128x384xf32, #tpu.memory_space<vmem>>, vector<128x384xf32>
    %cst_12 = arith.constant dense<0.000000e+00> : vector<128x384xf32>
    %31 = tpu.matmul %29, %30, %cst_12 {dimension_numbers = #tpu.dot_dimension_numbers<[1], [0], [0], [1], [0, 0, 1, 1], [], []>} : vector<128x128xf32>, vector<128x384xf32>, vector<128x384xf32> -> vector<128x384xf32>
    %c0_13 = arith.constant 0 : index
    %c0_14 = arith.constant 0 : index
    %32 = vector.load %arg6[%c0_13, %c0_14] : memref<1x384xf32, #tpu.memory_space<vmem>>, vector<1x384xf32>
    %33 = vector.shape_cast %32 : vector<1x384xf32> to vector<384xf32>
    %34 = vector.shape_cast %33 : vector<384xf32> to vector<1x384xf32>
    %35 = vector.broadcast %34 : vector<1x384xf32> to vector<128x384xf32>
    %36 = arith.addf %31, %35 : vector<128x384xf32>
    %37 = vector.extract_strided_slice %36 {offsets = [0, 0], sizes = [128, 128], strides = [1, 1]} : vector<128x384xf32> to vector<128x128xf32>
    %c0_15 = arith.constant 0 : index
    %c0_16 = arith.constant 0 : index
    %c0_17 = arith.constant 0 : index
    %38 = vector.load %arg7[%c0_15, %c0_16, %c0_17] : memref<1x128x128xf32, #tpu.memory_space<vmem>>, vector<1x128x128xf32>
    %39 = vector.shape_cast %38 : vector<1x128x128xf32> to vector<128x128xf32>
    %40 = vector.shape_cast %37 : vector<128x128xf32> to vector<1x128x128xf32>
    tpu.vector_store %arg7[%c0_15, %c0_16, %c0_17], %40 {strides = array<i32>} : memref<1x128x128xf32, #tpu.memory_space<vmem>>, vector<1x128x128xf32>,
    %41 = vector.extract_strided_slice %36 {offsets = [0, 128], sizes = [128, 128], strides = [1, 1]} : vector<128x384xf32> to vector<128x128xf32>
    %c0_18 = arith.constant 0 : index
    %c0_19 = arith.constant 0 : index
    %c0_20 = arith.constant 0 : index
    %42 = vector.load %arg8[%c0_18, %c0_19, %c0_20] : memref<1x128x128xf32, #tpu.memory_space<vmem>>, vector<1x128x128xf32>
    %43 = vector.shape_cast %42 : vector<1x128x128xf32> to vector<128x128xf32>
    %44 = vector.shape_cast %41 : vector<128x128xf32> to vector<1x128x128xf32>
    tpu.vector_store %arg8[%c0_18, %c0_19, %c0_20], %44 {strides = array<i32>} : memref<1x128x128xf32, #tpu.memory_space<vmem>>, vector<1x128x128xf32>,
    %45 = vector.extract_strided_slice %36 {offsets = [0, 256], sizes = [128, 128], strides = [1, 1]} : vector<128x384xf32> to vector<128x128xf32>
    %c0_21 = arith.constant 0 : index
    %c0_22 = arith.constant 0 : index
    %c0_23 = arith.constant 0 : index
    %46 = vector.load %arg9[%c0_21, %c0_22, %c0_23] : memref<1x128x128xf32, #tpu.memory_space<vmem>>, vector<1x128x128xf32>
    %47 = vector.shape_cast %46 : vector<1x128x128xf32> to vector<128x128xf32>
    %48 = vector.shape_cast %45 : vector<128x128xf32> to vector<1x128x128xf32>
    tpu.vector_store %arg9[%c0_21, %c0_22, %c0_23], %48 {strides = array<i32>} : memref<1x128x128xf32, #tpu.memory_space<vmem>>, vector<1x128x128xf32>,
    return
  }
  func.func @transform_0(%arg0: i32, %arg1: i32) -> (i32, i32, i32) {
    %c0_i32 = arith.constant 0 : i32
    %c0_i32_0 = arith.constant 0 : i32
    return %arg0, %arg1, %c0_i32 : i32, i32, i32
  }
  func.func @transform_1(%arg0: i32, %arg1: i32) -> (i32, i32) {
    %c0_i32 = arith.constant 0 : i32
    %c0_i32_0 = arith.constant 0 : i32
    %c0_i32_1 = arith.constant 0 : i32
    return %c0_i32, %c0_i32_0 : i32, i32
  }
  func.func @transform_2(%arg0: i32, %arg1: i32) -> (i32, i32) {
    %c0_i32 = arith.constant 0 : i32
    %c0_i32_0 = arith.constant 0 : i32
    %c0_i32_1 = arith.constant 0 : i32
    return %c0_i32, %c0_i32_0 : i32, i32
  }
  func.func @transform_3(%arg0: i32, %arg1: i32) -> (i32, i32) {
    %c0_i32 = arith.constant 0 : i32
    %c0_i32_0 = arith.constant 0 : i32
    %c0_i32_1 = arith.constant 0 : i32
    return %c0_i32, %c0_i32_0 : i32, i32
  }
  func.func @transform_4(%arg0: i32, %arg1: i32) -> (i32, i32) {
    %c0_i32 = arith.constant 0 : i32
    %c0_i32_0 = arith.constant 0 : i32
    %c0_i32_1 = arith.constant 0 : i32
    return %c0_i32, %c0_i32_0 : i32, i32
  }
  func.func @transform_5(%arg0: i32, %arg1: i32) -> (i32, i32, i32) {
    %c0_i32 = arith.constant 0 : i32
    %c0_i32_0 = arith.constant 0 : i32
    return %arg0, %arg1, %c0_i32 : i32, i32, i32
  }
  func.func @transform_6(%arg0: i32, %arg1: i32) -> (i32, i32, i32) {
    %c0_i32 = arith.constant 0 : i32
    %c0_i32_0 = arith.constant 0 : i32
    return %arg0, %arg1, %c0_i32 : i32, i32, i32
  }
  func.func @transform_7(%arg0: i32, %arg1: i32) -> (i32, i32, i32) {
    %c0_i32 = arith.constant 0 : i32
    %c0_i32_0 = arith.constant 0 : i32
    return %arg0, %arg1, %c0_i32 : i32, i32, i32
  }
}

</mosaic_0001>

<llo_original>
// kernel: tpu_custom_call.1
$region0: #{tpu_custom_call.1}
  #allocation0 [shape = 'u32[]', space=smem, size = 0x4, offset = 0x4, fixed_abs, tag = 'smem constant byte address 0x4 - core index']
  #allocation1 [shape = 'u32[144,128]{1,0:T(1,128)}', space=vmem, size = 0x12000, scoped, tag = 'internal scratch']
  %s0 = inlined_call_operand.hbm [shape: f32[8,128], index: 0, kind: input, shape index: {}]
  %s1 = inlined_call_operand.hbm [shape: f32[16,128], index: 1, kind: input, shape index: {}]
  %s2 = inlined_call_operand.hbm [shape: f32[16,128], index: 2, kind: output, shape index: {}]
  %s3 = sld [smem:[#allocation0]]
  $region49: #{tpu_custom_call.1} parent=0
    _
  %s5 = ssub.s32 1, %s3
  %s6 = scalar_select 0, %s5, %s3
  $region1: #{tpu_custom_call.1} parent=0
    #allocation2 [shape = 'u8[4096]{0}', space=vmem, size = 0x1000, scoped, tag = 'input window, operand 0, single buffered']
    #allocation3 [shape = 's32[2]{0}', space=sflag, size = 0x8, scoped, tag = 'scoped memory for tpu_custom_call.1']
    #allocation4 [shape = 's32[2]{0}', space=sflag, size = 0x8, scoped, tag = 'scoped memory for tpu_custom_call.1']
    #allocation5 [shape = 'u8[8192]{0}', space=vmem, size = 0x2000, scoped, tag = 'input window, operand 1']
    #allocation6 [shape = 's32[2]{0}', space=sflag, size = 0x8, scoped, tag = 'scoped memory for tpu_custom_call.1']
    #allocation7 [shape = 'u8[8192]{0}', space=vmem, size = 0x2000, scoped, tag = 'output window, operand 0']
    %7 = vsyncpa [#allocation3], 0
    %8 = vsyncpa [#allocation6], 0
    %s9 = scalar_lea.sflag [#allocation6], 1
    %10 = vsyncpa %s9, 0
    %11 = vsyncpa [#allocation4], 0
    %s12 = scalar_lea.sflag [#allocation4], 1
    %13 = vsyncpa %s12, 0
    loop: start=0, step=1, limit=4
    $region2: #{tpu_custom_call.1} parent=1 // loop_pre_header
      _
    $region3: #{tpu_custom_call.1} parent=1 // loop_header
      %s15 = sphi 0, %s19
      %p16 = scmp.ge.s32.totalorder %s15, 4
      %s23 = sphi 0, %s23
      %s25 = sphi 0, %s23
      %s26 = sphi 0, %s25
      %s40 = sphi 0, %s26
      %s46 = sphi 0, %s48
      %s49 = sphi 0, %s46
      %s50 = sphi 0, %s49
      %s66 = sphi 0, %s50
      %s72 = sphi 0, %s74
      %s75 = sphi 0, %s72
      %s76 = sphi 0, %s75
      %s92 = sphi 0, %s76
    $region4: #{tpu_custom_call.1} parent=1 // loop_header_branch
      %18 = sbr.rel (%p16) target = $region8
    $region5: #{tpu_custom_call.1} parent=1 // loop_body
      %s20 = ssub.s32 %s15, 1
      %s21 = ssub.s32 %s15, 2
      %s22 = sadd.s32 %s15, 1
      %s24 = sadd.s32 %s23, 1
      %p27 = scmp.eq.s32.totalorder %s15, 1
      %p28 = scmp.ne.s32.totalorder %s23, %s25
      %p29 = scmp.eq.s32.totalorder %s15, 0
      %p30 = por %p28, %p29
      %p31 = scmp.ne.s32.totalorder %s23, %s25
      %p32 = scmp.eq.s32.totalorder %s20, 1
      %p33 = por %p31, %p32
      %p34 = scmp.ne.s32.totalorder %s25, %s26
      %p35 = scmp.eq.s32.totalorder %s20, 0
      %p36 = por %p34, %p35
      %p37 = scmp.ne.s32.totalorder %s25, %s26
      %p38 = scmp.eq.s32.totalorder %s21, 1
      %p39 = por %p37, %p38
      %p41 = scmp.ne.s32.totalorder %s26, %s40
      %p42 = scmp.eq.s32.totalorder %s21, 0
      %p43 = por %p41, %p42
      %s44 = ssub.s32 %s15, %s22
      %p45 = scmp.eq.s32.totalorder %s44, 0
      %s47 = sadd.s32 %s46, 1
      %s48 = scalar_select %p45, %s46, %s47
      %p51 = pneg %p45
      %p52 = scmp.eq.s32.totalorder %s15, 1
      %p53 = por %p51, %p52
      %p54 = scmp.ne.s32.totalorder %s46, %s49
      %p55 = scmp.eq.s32.totalorder %s15, 0
      %p56 = por %p54, %p55
      %p57 = scmp.ne.s32.totalorder %s46, %s49
      %p58 = scmp.eq.s32.totalorder %s20, 1
      %p59 = por %p57, %p58
      %p60 = scmp.ne.s32.totalorder %s49, %s50
      %p61 = scmp.eq.s32.totalorder %s20, 0
      %p62 = por %p60, %p61
      %p63 = scmp.ne.s32.totalorder %s49, %s50
      %p64 = scmp.eq.s32.totalorder %s21, 1
      %p65 = por %p63, %p64
      %p67 = scmp.ne.s32.totalorder %s50, %s66
      %p68 = scmp.eq.s32.totalorder %s21, 0
      %p69 = por %p67, %p68
      %s70 = ssub.s32 %s15, %s22
      %p71 = scmp.eq.s32.totalorder %s70, 0
      %s73 = sadd.s32 %s72, 1
      %s74 = scalar_select %p71, %s72, %s73
      %p77 = pneg %p71
      %p78 = scmp.eq.s32.totalorder %s15, 1
      %p79 = por %p77, %p78
      %p80 = scmp.ne.s32.totalorder %s72, %s75
      %p81 = scmp.eq.s32.totalorder %s15, 0
      %p82 = por %p80, %p81
      %p83 = scmp.ne.s32.totalorder %s72, %s75
      %p84 = scmp.eq.s32.totalorder %s20, 1
      %p85 = por %p83, %p84
      %p86 = scmp.ne.s32.totalorder %s75, %s76
      %p87 = scmp.eq.s32.totalorder %s20, 0
      %p88 = por %p86, %p87
      %p89 = scmp.ne.s32.totalorder %s75, %s76
      %p90 = scmp.eq.s32.totalorder %s21, 1
      %p91 = por %p89, %p90
      %p93 = scmp.ne.s32.totalorder %s76, %s92
      %p94 = scmp.eq.s32.totalorder %s21, 0
      %p95 = por %p93, %p94
      %p96 = scmp.le.s32.totalorder 1, %s15
      %p97 = scmp.lt.s32.totalorder %s15, 3
      %p98 = pnand %p96, %p97
      %p99 = pneg %p98
      // Predicated region
      $region9: #{tpu_custom_call.1} parent=5 // pred_check
        _
      $region10: #{tpu_custom_call.1} parent=5 // pred_check_branch
        %101 = sbr.rel (%p98) target = $region12
      $region11: #{tpu_custom_call.1} parent=5 // pred_region
        %s102 = ssub.s32 %s15, 1
        // Predicated region
        $region13: #{tpu_custom_call.1} parent=11 // pred_check
          %p103 = pneg %p36
        $region14: #{tpu_custom_call.1} parent=11 // pred_check_branch
          %105 = sbr.rel (%p103) target = $region16
        $region15: #{tpu_custom_call.1} parent=11 // pred_region
          %s107 = ssub.s32 128, 128
          %108 = vsyncadd [#allocation3], %s107
          %s110 = sshll.u32 [#allocation2], 4
          %s111 = int_to_ptr.vmem [resolvable:$true] %s110
          %113 = dma.hbm_to_vmem [thread:$0]  %s0, 128, %s111, [#allocation3]
        $region16: #{tpu_custom_call.1} parent=11 // pred_fallthru
          _
      $region12: #{tpu_custom_call.1} parent=5 // pred_fallthru
        _
      %p114 = scmp.lt.s32.totalorder %s15, 2
      // Predicated region
      $region17: #{tpu_custom_call.1} parent=5 // pred_check
        %p115 = pneg %p114
      $region18: #{tpu_custom_call.1} parent=5 // pred_check_branch
        %117 = sbr.rel (%p115) target = $region20
      $region19: #{tpu_custom_call.1} parent=5 // pred_region
        // Predicated region
        $region21: #{tpu_custom_call.1} parent=19 // pred_check
          %p118 = pneg %p56
        $region22: #{tpu_custom_call.1} parent=19 // pred_check_branch
          %120 = sbr.rel (%p118) target = $region24
        $region23: #{tpu_custom_call.1} parent=19 // pred_region
          %s121 = sand.u32 %s46, 1
          %s122 = scalar_lea.sflag [#allocation6], %s121
          %s123 = sand.u32 %s46, 1
          %s124 = smul.addr %s123, 8
          %s125 = scalar_lea.vmem [#allocation5], %s124
          %s127 = ssub.s32 128, 128
          %128 = vsyncadd %s122, %s127
          %s129 = smul.addr %s15, 128
          %s130 = scalar_lea.hbm %s1, %s129
          %s132 = sshll.u32 %s125, 4
          %s133 = int_to_ptr.vmem [resolvable:$true] %s132
          %135 = dma.hbm_to_vmem [thread:$0]  %s130, 128, %s133, %s122
        $region24: #{tpu_custom_call.1} parent=19 // pred_fallthru
          _
      $region20: #{tpu_custom_call.1} parent=5 // pred_fallthru
        _
      %p136 = scmp.le.s32.totalorder 1, %s15
      %p137 = scmp.lt.s32.totalorder %s15, 3
      %p138 = pnand %p136, %p137
      %p139 = pneg %p138
      // Predicated region
      $region25: #{tpu_custom_call.1} parent=5 // pred_check
        _
      $region26: #{tpu_custom_call.1} parent=5 // pred_check_branch
        %141 = sbr.rel (%p138) target = $region28
      $region27: #{tpu_custom_call.1} parent=5 // pred_region
        %s142 = ssub.s32 %s15, 1
        // Predicated region
        $region29: #{tpu_custom_call.1} parent=27 // pred_check
          %p143 = pneg %p36
        $region30: #{tpu_custom_call.1} parent=27 // pred_check_branch
          %145 = sbr.rel (%p143) target = $region32
        $region31: #{tpu_custom_call.1} parent=27 // pred_region
          %146 = dma.done [#allocation3], 128
        $region32: #{tpu_custom_call.1} parent=27 // pred_fallthru
          _
        %s147 = sand.u32 %s49, 1
        %s148 = scalar_lea.sflag [#allocation6], %s147
        %s149 = sand.u32 %s49, 1
        %s150 = smul.addr %s149, 8
        %s151 = scalar_lea.vmem [#allocation5], %s150
        // Predicated region
        $region33: #{tpu_custom_call.1} parent=27 // pred_check
          %p152 = pneg %p62
        $region34: #{tpu_custom_call.1} parent=27 // pred_check_branch
          %154 = sbr.rel (%p152) target = $region36
        $region35: #{tpu_custom_call.1} parent=27 // pred_region
          %155 = dma.done %s148, 128
        $region36: #{tpu_custom_call.1} parent=27 // pred_fallthru
          _
        %p156 = pneg %p36
        %p157 = pneg %p33
        %s158 = sand.u32 %s49, 1
        %s159 = scalar_lea.sflag [#allocation6], %s158
        %s160 = sand.u32 %s49, 1
        %s161 = smul.addr %s160, 8
        %s162 = scalar_lea.vmem [#allocation5], %s161
        %p163 = pneg %p62
        %p164 = pneg %p59
        %p165 = pneg %p88
        %p166 = pneg %p85
        %s167 = sand.u32 %s75, 1
        %s168 = scalar_lea.sflag [#allocation4], %s167
        %s169 = sand.u32 %s75, 1
        %s170 = smul.addr %s169, 8
        %s171 = scalar_lea.vmem [#allocation7], %s170
        %v172 = vld [vmem:[%s151] sm:$0xff]
        %v173 = vld [vmem:[#allocation2] sm:$0xff]
        %v174 = vadd.f32 %v172, %v173
        %175 = vst [vmem:[%s171] sm:$0xff] %v174
        %s176 = sand.u32 %s75, 1
        %s177 = scalar_lea.sflag [#allocation4], %s176
        %s178 = sand.u32 %s75, 1
        %s179 = smul.addr %s178, 8
        %s180 = scalar_lea.vmem [#allocation7], %s179
        // Predicated region
        $region37: #{tpu_custom_call.1} parent=27 // pred_check
          %p181 = pneg %p85
        $region38: #{tpu_custom_call.1} parent=27 // pred_check_branch
          %183 = sbr.rel (%p181) target = $region40
        $region39: #{tpu_custom_call.1} parent=27 // pred_region
          %s185 = ssub.s32 128, 128
          %186 = vsyncadd %s177, %s185
          %s187 = smul.addr %s20, 128
          %s188 = scalar_lea.hbm %s2, %s187
          %s190 = sshll.u32 %s180, 4
          %s191 = int_to_ptr.vmem [resolvable:$true] %s190
          %193 = dma.vmem_to_hbm [thread:$0]  %s191, 128, %s188, %s177
        $region40: #{tpu_custom_call.1} parent=27 // pred_fallthru
          _
      $region28: #{tpu_custom_call.1} parent=5 // pred_fallthru
        _
      %p194 = scmp.le.s32.totalorder 2, %s15
      // Predicated region
      $region41: #{tpu_custom_call.1} parent=5 // pred_check
        %p195 = pneg %p194
      $region42: #{tpu_custom_call.1} parent=5 // pred_check_branch
        %197 = sbr.rel (%p195) target = $region44
      $region43: #{tpu_custom_call.1} parent=5 // pred_region
        %s198 = ssub.s32 %s15, 2
        // Predicated region
        $region45: #{tpu_custom_call.1} parent=43 // pred_check
          %p199 = pneg %p91
        $region46: #{tpu_custom_call.1} parent=43 // pred_check_branch
          %201 = sbr.rel (%p199) target = $region48
        $region47: #{tpu_custom_call.1} parent=43 // pred_region
          %s202 = sand.u32 %s76, 1
          %s203 = scalar_lea.sflag [#allocation4], %s202
          %s204 = sand.u32 %s76, 1
          %s205 = smul.addr %s204, 8
          %s206 = scalar_lea.vmem [#allocation7], %s205
          %207 = dma.done %s203, 128
        $region48: #{tpu_custom_call.1} parent=43 // pred_fallthru
          _
      $region44: #{tpu_custom_call.1} parent=5 // pred_fallthru
        _
    $region6: #{tpu_custom_call.1} parent=1 // loop_footer
      %s19 = sadd.s32 1, %s15
    $region7: #{tpu_custom_call.1} parent=1 // loop_footer_branch
      %14 = sbr.rel target = $region3
    $region8: #{tpu_custom_call.1} parent=1 // loop_exit
      _
    %208 = vsyncpa [#allocation3], 1
    %s209 = scalar_lea.sflag [#allocation3], 1
    %210 = vsyncpa %s209, 1
    %211 = vsyncpa [#allocation6], 1
    %s212 = scalar_lea.sflag [#allocation6], 1
    %213 = vsyncpa %s212, 1
    %214 = vsyncpa [#allocation4], 1
    %s215 = scalar_lea.sflag [#allocation4], 1
    %216 = vsyncpa %s215, 1

// kernel: tpu_custom_call.1
$region0: #{tpu_custom_call.1}
  #allocation0 [shape = 'u32[]', space=smem, size = 0x4, offset = 0x4, fixed_abs, tag = 'smem constant byte address 0x4 - core index']
  #allocation1 [shape = 'u32[144,128]{1,0:T(1,128)}', space=vmem, size = 0x12000, scoped, tag = 'internal scratch']
  %s0 = inlined_call_operand.hbm [shape: f32[2,256,128], index: 0, kind: input, shape index: {}]
  %s1 = inlined_call_operand.vmem [shape: f32[1,128], index: 1, kind: input, shape index: {}]
  %s2 = inlined_call_operand.vmem [shape: f32[1,128], index: 2, kind: input, shape index: {}]
  %s3 = inlined_call_operand.hbm [shape: f32[128,384], index: 3, kind: input, shape index: {}]
  %s4 = inlined_call_operand.vmem [shape: f32[1,384], index: 4, kind: input, shape index: {}]
  %s5 = inlined_call_operand.hbm [shape: f32[2,256,128], index: 5, kind: output, shape index: {0}]
  %s6 = inlined_call_operand.hbm [shape: f32[2,256,128], index: 6, kind: output, shape index: {1}]
  %s7 = inlined_call_operand.hbm [shape: f32[2,256,128], index: 7, kind: output, shape index: {2}]
  %8 = xla_tuple %s5, %s6, %s7
  %s9 = sld [smem:[#allocation0]]
  $region77: #{tpu_custom_call.1} parent=0
    _
  %s11 = ssub.s32 1, %s9
  %s12 = scalar_select 0, %s11, %s9
  $region1: #{tpu_custom_call.1} parent=0
    #allocation2 [shape = 'u8[131072]{0}', space=vmem, size = 0x20000, scoped, tag = 'input window, operand 0']
    #allocation3 [shape = 's32[2]{0}', space=sflag, size = 0x8, scoped, tag = 'scoped memory for tpu_custom_call.1']
    #allocation4 [shape = 's32[2]{0}', space=sflag, size = 0x8, scoped, tag = 'scoped memory for tpu_custom_call.1']
    #allocation5 [shape = 'u8[196608]{0}', space=vmem, size = 0x30000, scoped, tag = 'input window, operand 3, single buffered']
    #allocation6 [shape = 's32[1]{0}', space=sflag, size = 0x4, scoped, tag = 'scoped memory for tpu_custom_call.1']
    #allocation7 [shape = 'u8[131072]{0}', space=vmem, size = 0x20000, scoped, tag = 'output window, operand 0']
    #allocation8 [shape = 'u8[131072]{0}', space=vmem, size = 0x20000, scoped, tag = 'output window, operand 1']
    #allocation9 [shape = 's32[2]{0}', space=sflag, size = 0x8, scoped, tag = 'scoped memory for tpu_custom_call.1']
    #allocation10 [shape = 'u8[131072]{0}', space=vmem, size = 0x20000, scoped, tag = 'output window, operand 2']
    %13 = vsyncpa [#allocation3], 0
    %s14 = scalar_lea.sflag [#allocation3], 1
    %15 = vsyncpa %s14, 0
    %16 = vsyncpa [#allocation6], 0
    %17 = vsyncpa [#allocation4], 0
    %s18 = scalar_lea.sflag [#allocation4], 1
    %19 = vsyncpa %s18, 0
    %20 = vsyncpa [#allocation9], 0
    %s21 = scalar_lea.sflag [#allocation9], 1
    %22 = vsyncpa %s21, 0
    loop: start=0, step=1, limit=6
    $region2: #{tpu_custom_call.1} parent=1 // loop_pre_header
      _
    $region3: #{tpu_custom_call.1} parent=1 // loop_header
      %s24 = sphi 0, %s28
      %p25 = scmp.ge.s32.totalorder %s24, 6
      %s31 = sphi 0, %s43
      %s32 = sphi 0, %s39
      %s33 = sphi 0, %s31
      %s34 = sphi 0, %s32
      %s35 = sphi 0, %s33
      %s36 = sphi 0, %s34
      %s48 = sphi 0, %s50
      %s51 = sphi 0, %s48
      %s52 = sphi 0, %s51
      %s68 = sphi 0, %s52
      %s72 = sphi 0, %s72
      %s74 = sphi 0, %s72
      %s75 = sphi 0, %s74
      %s89 = sphi 0, %s75
      %s93 = sphi 0, %s93
      %s95 = sphi 0, %s93
      %s96 = sphi 0, %s95
      %s110 = sphi 0, %s96
      %s114 = sphi 0, %s114
      %s116 = sphi 0, %s114
      %s117 = sphi 0, %s116
      %s131 = sphi 0, %s117
      %s135 = sphi 0, %s135
      %s137 = sphi 0, %s135
      %s138 = sphi 0, %s137
      %s152 = sphi 0, %s138
      %s160 = sphi 0, %s162
      %s163 = sphi 0, %s160
      %s164 = sphi 0, %s163
      %s180 = sphi 0, %s164
      %s188 = sphi 0, %s190
      %s191 = sphi 0, %s188
      %s192 = sphi 0, %s191
      %s208 = sphi 0, %s192
      %s216 = sphi 0, %s218
      %s219 = sphi 0, %s216
      %s220 = sphi 0, %s219
      %s236 = sphi 0, %s220
    $region4: #{tpu_custom_call.1} parent=1 // loop_header_branch
      %27 = sbr.rel (%p25) target = $region8
    $region5: #{tpu_custom_call.1} parent=1 // loop_body
      %s29 = ssub.s32 %s24, 1
      %s30 = ssub.s32 %s24, 2
      %s37 = sadd.s32 1, %s32
      %p38 = scmp.ge.s32.totalorder %s37, 2
      %s39 = scalar_select %p38, 0, %s37
      %s40 = sadd.s32 1, %s31
      %s41 = scalar_select %p38, %s40, %s31
      %p42 = scmp.ge.s32.totalorder %s41, 2
      %s43 = scalar_select %p42, 0, %s41
      %s44 = ssub.s32 %s31, %s43
      %s45 = ssub.s32 %s32, %s39
      %s46 = sor.u32 %s44, %s45
      %p47 = scmp.eq.s32.totalorder %s46, 0
      %s49 = sadd.s32 %s48, 1
      %s50 = scalar_select %p47, %s48, %s49
      %p53 = pneg %p47
      %p54 = scmp.eq.s32.totalorder %s24, 3
      %p55 = por %p53, %p54
      %p56 = scmp.ne.s32.totalorder %s48, %s51
      %p57 = scmp.eq.s32.totalorder %s24, 0
      %p58 = por %p56, %p57
      %p59 = scmp.ne.s32.totalorder %s48, %s51
      %p60 = scmp.eq.s32.totalorder %s29, 3
      %p61 = por %p59, %p60
      %p62 = scmp.ne.s32.totalorder %s51, %s52
      %p63 = scmp.eq.s32.totalorder %s29, 0
      %p64 = por %p62, %p63
      %p65 = scmp.ne.s32.totalorder %s51, %s52
      %p66 = scmp.eq.s32.totalorder %s30, 3
      %p67 = por %p65, %p66
      %p69 = scmp.ne.s32.totalorder %s52, %s68
      %p70 = scmp.eq.s32.totalorder %s30, 0
      %p71 = por %p69, %p70
      %s73 = sadd.s32 %s72, 1
      %p76 = scmp.eq.s32.totalorder %s24, 3
      %p77 = scmp.ne.s32.totalorder %s72, %s74
      %p78 = scmp.eq.s32.totalorder %s24, 0
      %p79 = por %p77, %p78
      %p80 = scmp.ne.s32.totalorder %s72, %s74
      %p81 = scmp.eq.s32.totalorder %s29, 3
      %p82 = por %p80, %p81
      %p83 = scmp.ne.s32.totalorder %s74, %s75
      %p84 = scmp.eq.s32.totalorder %s29, 0
      %p85 = por %p83, %p84
      %p86 = scmp.ne.s32.totalorder %s74, %s75
      %p87 = scmp.eq.s32.totalorder %s30, 3
      %p88 = por %p86, %p87
      %p90 = scmp.ne.s32.totalorder %s75, %s89
      %p91 = scmp.eq.s32.totalorder %s30, 0
      %p92 = por %p90, %p91
      %s94 = sadd.s32 %s93, 1
      %p97 = scmp.eq.s32.totalorder %s24, 3
      %p98 = scmp.ne.s32.totalorder %s93, %s95
      %p99 = scmp.eq.s32.totalorder %s24, 0
      %p100 = por %p98, %p99
      %p101 = scmp.ne.s32.totalorder %s93, %s95
      %p102 = scmp.eq.s32.totalorder %s29, 3
      %p103 = por %p101, %p102
      %p104 = scmp.ne.s32.totalorder %s95, %s96
      %p105 = scmp.eq.s32.totalorder %s29, 0
      %p106 = por %p104, %p105
      %p107 = scmp.ne.s32.totalorder %s95, %s96
      %p108 = scmp.eq.s32.totalorder %s30, 3
      %p109 = por %p107, %p108
      %p111 = scmp.ne.s32.totalorder %s96, %s110
      %p112 = scmp.eq.s32.totalorder %s30, 0
      %p113 = por %p111, %p112
      %s115 = sadd.s32 %s114, 1
      %p118 = scmp.eq.s32.totalorder %s24, 3
      %p119 = scmp.ne.s32.totalorder %s114, %s116
      %p120 = scmp.eq.s32.totalorder %s24, 0
      %p121 = por %p119, %p120
      %p122 = scmp.ne.s32.totalorder %s114, %s116
      %p123 = scmp.eq.s32.totalorder %s29, 3
      %p124 = por %p122, %p123
      %p125 = scmp.ne.s32.totalorder %s116, %s117
      %p126 = scmp.eq.s32.totalorder %s29, 0
      %p127 = por %p125, %p126
      %p128 = scmp.ne.s32.totalorder %s116, %s117
      %p129 = scmp.eq.s32.totalorder %s30, 3
      %p130 = por %p128, %p129
      %p132 = scmp.ne.s32.totalorder %s117, %s131
      %p133 = scmp.eq.s32.totalorder %s30, 0
      %p134 = por %p132, %p133
      %s136 = sadd.s32 %s135, 1
      %p139 = scmp.eq.s32.totalorder %s24, 3
      %p140 = scmp.ne.s32.totalorder %s135, %s137
      %p141 = scmp.eq.s32.totalorder %s24, 0
      %p142 = por %p140, %p141
      %p143 = scmp.ne.s32.totalorder %s135, %s137
      %p144 = scmp.eq.s32.totalorder %s29, 3
      %p145 = por %p143, %p144
      %p146 = scmp.ne.s32.totalorder %s137, %s138
      %p147 = scmp.eq.s32.totalorder %s29, 0
      %p148 = por %p146, %p147
      %p149 = scmp.ne.s32.totalorder %s137, %s138
      %p150 = scmp.eq.s32.totalorder %s30, 3
      %p151 = por %p149, %p150
      %p153 = scmp.ne.s32.totalorder %s138, %s152
      %p154 = scmp.eq.s32.totalorder %s30, 0
      %p155 = por %p153, %p154
      %s156 = ssub.s32 %s31, %s43
      %s157 = ssub.s32 %s32, %s39
      %s158 = sor.u32 %s156, %s157
      %p159 = scmp.eq.s32.totalorder %s158, 0
      %s161 = sadd.s32 %s160, 1
      %s162 = scalar_select %p159, %s160, %s161
      %p165 = pneg %p159
      %p166 = scmp.eq.s32.totalorder %s24, 3
      %p167 = por %p165, %p166
      %p168 = scmp.ne.s32.totalorder %s160, %s163
      %p169 = scmp.eq.s32.totalorder %s24, 0
      %p170 = por %p168, %p169
      %p171 = scmp.ne.s32.totalorder %s160, %s163
      %p172 = scmp.eq.s32.totalorder %s29, 3
      %p173 = por %p171, %p172
      %p174 = scmp.ne.s32.totalorder %s163, %s164
      %p175 = scmp.eq.s32.totalorder %s29, 0
      %p176 = por %p174, %p175
      %p177 = scmp.ne.s32.totalorder %s163, %s164
      %p178 = scmp.eq.s32.totalorder %s30, 3
      %p179 = por %p177, %p178
      %p181 = scmp.ne.s32.totalorder %s164, %s180
      %p182 = scmp.eq.s32.totalorder %s30, 0
      %p183 = por %p181, %p182
      %s184 = ssub.s32 %s31, %s43
      %s185 = ssub.s32 %s32, %s39
      %s186 = sor.u32 %s184, %s185
      %p187 = scmp.eq.s32.totalorder %s186, 0
      %s189 = sadd.s32 %s188, 1
      %s190 = scalar_select %p187, %s188, %s189
      %p193 = pneg %p187
      %p194 = scmp.eq.s32.totalorder %s24, 3
      %p195 = por %p193, %p194
      %p196 = scmp.ne.s32.totalorder %s188, %s191
      %p197 = scmp.eq.s32.totalorder %s24, 0
      %p198 = por %p196, %p197
      %p199 = scmp.ne.s32.totalorder %s188, %s191
      %p200 = scmp.eq.s32.totalorder %s29, 3
      %p201 = por %p199, %p200
      %p202 = scmp.ne.s32.totalorder %s191, %s192
      %p203 = scmp.eq.s32.totalorder %s29, 0
      %p204 = por %p202, %p203
      %p205 = scmp.ne.s32.totalorder %s191, %s192
      %p206 = scmp.eq.s32.totalorder %s30, 3
      %p207 = por %p205, %p206
      %p209 = scmp.ne.s32.totalorder %s192, %s208
      %p210 = scmp.eq.s32.totalorder %s30, 0
      %p211 = por %p209, %p210
      %s212 = ssub.s32 %s31, %s43
      %s213 = ssub.s32 %s32, %s39
      %s214 = sor.u32 %s212, %s213
      %p215 = scmp.eq.s32.totalorder %s214, 0
      %s217 = sadd.s32 %s216, 1
      %s218 = scalar_select %p215, %s216, %s217
      %p221 = pneg %p215
      %p222 = scmp.eq.s32.totalorder %s24, 3
      %p223 = por %p221, %p222
      %p224 = scmp.ne.s32.totalorder %s216, %s219
      %p225 = scmp.eq.s32.totalorder %s24, 0
      %p226 = por %p224, %p225
      %p227 = scmp.ne.s32.totalorder %s216, %s219
      %p228 = scmp.eq.s32.totalorder %s29, 3
      %p229 = por %p227, %p228
      %p230 = scmp.ne.s32.totalorder %s219, %s220
      %p231 = scmp.eq.s32.totalorder %s29, 0
      %p232 = por %p230, %p231
      %p233 = scmp.ne.s32.totalorder %s219, %s220
      %p234 = scmp.eq.s32.totalorder %s30, 3
      %p235 = por %p233, %p234
      %p237 = scmp.ne.s32.totalorder %s220, %s236
      %p238 = scmp.eq.s32.totalorder %s30, 0
      %p239 = por %p237, %p238
      %p240 = scmp.le.s32.totalorder 1, %s24
      %p241 = scmp.lt.s32.totalorder %s24, 5
      %p242 = pnand %p240, %p241
      %p243 = pneg %p242
      // Predicated region
      $region9: #{tpu_custom_call.1} parent=5 // pred_check
        _
      $region10: #{tpu_custom_call.1} parent=5 // pred_check_branch
        %245 = sbr.rel (%p242) target = $region12
      $region11: #{tpu_custom_call.1} parent=5 // pred_region
        %s246 = ssub.s32 %s24, 1
        // Predicated region
        $region13: #{tpu_custom_call.1} parent=11 // pred_check
          %p247 = pneg %p85
        $region14: #{tpu_custom_call.1} parent=11 // pred_check_branch
          %249 = sbr.rel (%p247) target = $region16
        $region15: #{tpu_custom_call.1} parent=11 // pred_region
          _
        $region16: #{tpu_custom_call.1} parent=11 // pred_fallthru
          _
        // Predicated region
        $region17: #{tpu_custom_call.1} parent=11 // pred_check
          %p250 = pneg %p106
        $region18: #{tpu_custom_call.1} parent=11 // pred_check_branch
          %252 = sbr.rel (%p250) target = $region20
        $region19: #{tpu_custom_call.1} parent=11 // pred_region
          _
        $region20: #{tpu_custom_call.1} parent=11 // pred_fallthru
          _
        // Predicated region
        $region21: #{tpu_custom_call.1} parent=11 // pred_check
          %p253 = pneg %p127
        $region22: #{tpu_custom_call.1} parent=11 // pred_check_branch
          %255 = sbr.rel (%p253) target = $region24
        $region23: #{tpu_custom_call.1} parent=11 // pred_region
          %s257 = ssub.s32 6144, 6144
          %258 = vsyncadd [#allocation6], %s257
          %s259 = sshll.u32 [#allocation5], 4
          %s260 = int_to_ptr.vmem [resolvable:$true] %s259
          %265 = dma.hbm_to_vmem [thread:$0]  %s3, 6144, %s260, [#allocation6], 384, 384, 24
        $region24: #{tpu_custom_call.1} parent=11 // pred_fallthru
          _
        // Predicated region
        $region25: #{tpu_custom_call.1} parent=11 // pred_check
          %p266 = pneg %p148
        $region26: #{tpu_custom_call.1} parent=11 // pred_check_branch
          %268 = sbr.rel (%p266) target = $region28
        $region27: #{tpu_custom_call.1} parent=11 // pred_region
          _
        $region28: #{tpu_custom_call.1} parent=11 // pred_fallthru
          _
      $region12: #{tpu_custom_call.1} parent=5 // pred_fallthru
        _
      %p269 = scmp.lt.s32.totalorder %s24, 4
      // Predicated region
      $region29: #{tpu_custom_call.1} parent=5 // pred_check
        %p270 = pneg %p269
      $region30: #{tpu_custom_call.1} parent=5 // pred_check_branch
        %272 = sbr.rel (%p270) target = $region32
      $region31: #{tpu_custom_call.1} parent=5 // pred_region
        // Predicated region
        $region33: #{tpu_custom_call.1} parent=31 // pred_check
          %p273 = pneg %p58
        $region34: #{tpu_custom_call.1} parent=31 // pred_check_branch
          %275 = sbr.rel (%p273) target = $region36
        $region35: #{tpu_custom_call.1} parent=31 // pred_region
          %s276 = sand.u32 %s48, 1
          %s277 = scalar_lea.sflag [#allocation3], %s276
          %s278 = sand.u32 %s48, 1
          %s279 = smul.addr %s278, 128
          %s280 = scalar_lea.vmem [#allocation2], %s279
          %s281 = smul.u32 16, %s32
          %s283 = ssub.s32 2048, 2048
          %284 = vsyncadd %s277, %s283
          %s285 = smul.addr %s31, 32
          %s286 = sadd.s32 %s281, %s285
          %s287 = smul.addr %s286, 128
          %s288 = scalar_lea.hbm %s0, %s287
          %s289 = sshll.u32 %s280, 4
          %s290 = int_to_ptr.vmem [resolvable:$true] %s289
          %295 = dma.hbm_to_vmem [thread:$0]  %s288, 2048, %s290, %s277, 128, 128, 8
        $region36: #{tpu_custom_call.1} parent=31 // pred_fallthru
          _
      $region32: #{tpu_custom_call.1} parent=5 // pred_fallthru
        _
      %p296 = scmp.le.s32.totalorder 1, %s24
      %p297 = scmp.lt.s32.totalorder %s24, 5
      %p298 = pnand %p296, %p297
      %p299 = pneg %p298
      // Predicated region
      $region37: #{tpu_custom_call.1} parent=5 // pred_check
        _
      $region38: #{tpu_custom_call.1} parent=5 // pred_check_branch
        %301 = sbr.rel (%p298) target = $region40
      $region39: #{tpu_custom_call.1} parent=5 // pred_region
        %s302 = ssub.s32 %s24, 1
        %s303 = sand.u32 %s51, 1
        %s304 = scalar_lea.sflag [#allocation3], %s303
        %s305 = sand.u32 %s51, 1
        %s306 = smul.addr %s305, 128
        %s307 = scalar_lea.vmem [#allocation2], %s306
        // Predicated region
        $region41: #{tpu_custom_call.1} parent=39 // pred_check
          %p308 = pneg %p64
        $region42: #{tpu_custom_call.1} parent=39 // pred_check_branch
          %310 = sbr.rel (%p308) target = $region44
        $region43: #{tpu_custom_call.1} parent=39 // pred_region
          %311 = dma.done %s304, 2048
        $region44: #{tpu_custom_call.1} parent=39 // pred_fallthru
          _
        // Predicated region
        $region45: #{tpu_custom_call.1} parent=39 // pred_check
          %p312 = pneg %p127
        $region46: #{tpu_custom_call.1} parent=39 // pred_check_branch
          %314 = sbr.rel (%p312) target = $region48
        $region47: #{tpu_custom_call.1} parent=39 // pred_region
          %315 = dma.done [#allocation6], 6144
        $region48: #{tpu_custom_call.1} parent=39 // pred_fallthru
          _
        %s316 = sand.u32 %s51, 1
        %s317 = scalar_lea.sflag [#allocation3], %s316
        %s318 = sand.u32 %s51, 1
        %s319 = smul.addr %s318, 128
        %s320 = scalar_lea.vmem [#allocation2], %s319
        %p321 = pneg %p64
        %p322 = pneg %p61
        %p323 = pneg %p85
        %p324 = pneg %p82
        %p325 = pneg %p106
        %p326 = pneg %p103
        %p327 = pneg %p127
        %p328 = pneg %p124
        %p329 = pneg %p148
        %p330 = pneg %p145
        %p331 = pneg %p176
        %p332 = pneg %p173
        %s333 = sand.u32 %s163, 1
        %s334 = scalar_lea.sflag [#allocation4], %s333
        %s335 = sand.u32 %s163, 1
        %s336 = smul.addr %s335, 128
        %s337 = scalar_lea.vmem [#allocation7], %s336
        %p338 = pneg %p204
        %p339 = pneg %p201
        %s340 = sand.u32 %s29, 1
        %s341 = scalar_lea.sflag [#allocation9], %s340
        %s342 = sand.u32 %s191, 1
        %s343 = smul.addr %s342, 128
        %s344 = scalar_lea.vmem [#allocation8], %s343
        %p345 = pneg %p232
        %p346 = pneg %p229
        %s347 = sand.u32 %s29, 1
        %s348 = scalar_lea.sflag [#allocation9], %s347
        %s349 = sand.u32 %s219, 1
        %s350 = smul.addr %s349, 128
        %s351 = scalar_lea.vmem [#allocation10], %s350
        %s352 = smul.u32 16, %s34
        %s353 = smul.u32 16, %s34
        %s354 = smul.u32 16, %s34
        %s355 = smul.u32 16, %s34
        %v356 = vld [vmem:[%s307] sm:$0xff]
        %v357 = vld [vmem:[%s307 + $0x8] sm:$0xff]
        %v358 = vld [vmem:[%s307 + $0x10] sm:$0xff]
        %v359 = vld [vmem:[%s307 + $0x18] sm:$0xff]
        %v360 = vld [vmem:[%s307 + $0x20] sm:$0xff]
        %v361 = vld [vmem:[%s307 + $0x28] sm:$0xff]
        %v362 = vld [vmem:[%s307 + $0x30] sm:$0xff]
        %v363 = vld [vmem:[%s307 + $0x38] sm:$0xff]
        %v364 = vld [vmem:[%s307 + $0x40] sm:$0xff]
        %v365 = vld [vmem:[%s307 + $0x48] sm:$0xff]
        %v366 = vld [vmem:[%s307 + $0x50] sm:$0xff]
        %v367 = vld [vmem:[%s307 + $0x58] sm:$0xff]
        %v368 = vld [vmem:[%s307 + $0x60] sm:$0xff]
        %v369 = vld [vmem:[%s307 + $0x68] sm:$0xff]
        %v370 = vld [vmem:[%s307 + $0x70] sm:$0xff]
        %v371 = vld [vmem:[%s307 + $0x78] sm:$0xff]
        %v372 = vld [vmem:[%s1] sm:$0x1]
        %v373 = vld [vmem:[%s2] sm:$0x1]
        %374 = vadd.xlane.f32.xlu0 %v356
        %v375 = vpop.xlane.xlu0 %374
        %376 = vadd.xlane.f32.xlu0 %v357
        %v377 = vpop.xlane.xlu0 %376
        %378 = vadd.xlane.f32.xlu0 %v358
        %v379 = vpop.xlane.xlu0 %378
        %380 = vadd.xlane.f32.xlu0 %v359
        %v381 = vpop.xlane.xlu0 %380
        %382 = vadd.xlane.f32.xlu0 %v360
        %v383 = vpop.xlane.xlu0 %382
        %384 = vadd.xlane.f32.xlu0 %v361
        %v385 = vpop.xlane.xlu0 %384
        %386 = vadd.xlane.f32.xlu0 %v362
        %v387 = vpop.xlane.xlu0 %386
        %388 = vadd.xlane.f32.xlu0 %v363
        %v389 = vpop.xlane.xlu0 %388
        %390 = vadd.xlane.f32.xlu0 %v364
        %v391 = vpop.xlane.xlu0 %390
        %392 = vadd.xlane.f32.xlu0 %v365
        %v393 = vpop.xlane.xlu0 %392
        %394 = vadd.xlane.f32.xlu0 %v366
        %v395 = vpop.xlane.xlu0 %394
        %396 = vadd.xlane.f32.xlu0 %v367
        %v397 = vpop.xlane.xlu0 %396
        %398 = vadd.xlane.f32.xlu0 %v368
        %v399 = vpop.xlane.xlu0 %398
        %400 = vadd.xlane.f32.xlu0 %v369
        %v401 = vpop.xlane.xlu0 %400
        %402 = vadd.xlane.f32.xlu0 %v370
        %v403 = vpop.xlane.xlu0 %402
        %404 = vadd.xlane.f32.xlu0 %v371
        %v405 = vpop.xlane.xlu0 %404
        %v406 = vrcp.pop 128.0
        %v407 = vmul.f32 %v375, %v406
        %v408 = vmul.f32 %v377, %v406
        %v409 = vmul.f32 %v379, %v406
        %v410 = vmul.f32 %v381, %v406
        %v411 = vmul.f32 %v383, %v406
        %v412 = vmul.f32 %v385, %v406
        %v413 = vmul.f32 %v387, %v406
        %v414 = vmul.f32 %v389, %v406
        %v415 = vmul.f32 %v391, %v406
        %v416 = vmul.f32 %v393, %v406
        %v417 = vmul.f32 %v395, %v406
        %v418 = vmul.f32 %v397, %v406
        %v419 = vmul.f32 %v399, %v406
        %v420 = vmul.f32 %v401, %v406
        %v421 = vmul.f32 %v403, %v406
        %v422 = vmul.f32 %v405, %v406
        %v423 = vsub.f32 %v356, %v407
        %v424 = vsub.f32 %v357, %v408
        %v425 = vsub.f32 %v358, %v409
        %v426 = vsub.f32 %v359, %v410
        %v427 = vsub.f32 %v360, %v411
        %v428 = vsub.f32 %v361, %v412
        %v429 = vsub.f32 %v362, %v413
        %v430 = vsub.f32 %v363, %v414
        %v431 = vsub.f32 %v364, %v415
        %v432 = vsub.f32 %v365, %v416
        %v433 = vsub.f32 %v366, %v417
        %v434 = vsub.f32 %v367, %v418
        %v435 = vsub.f32 %v368, %v419
        %v436 = vsub.f32 %v369, %v420
        %v437 = vsub.f32 %v370, %v421
        %v438 = vsub.f32 %v371, %v422
        %v439 = vmul.f32 %v423, %v423
        %v440 = vmul.f32 %v424, %v424
        %v441 = vmul.f32 %v425, %v425
        %v442 = vmul.f32 %v426, %v426
        %v443 = vmul.f32 %v427, %v427
        %v444 = vmul.f32 %v428, %v428
        %v445 = vmul.f32 %v429, %v429
        %v446 = vmul.f32 %v430, %v430
        %v447 = vmul.f32 %v431, %v431
        %v448 = vmul.f32 %v432, %v432
        %v449 = vmul.f32 %v433, %v433
        %v450 = vmul.f32 %v434, %v434
        %v451 = vmul.f32 %v435, %v435
        %v452 = vmul.f32 %v436, %v436
        %v453 = vmul.f32 %v437, %v437
        %v454 = vmul.f32 %v438, %v438
        %455 = vadd.xlane.f32.xlu0 %v439
        %v456 = vpop.xlane.xlu0 %455
        %457 = vadd.xlane.f32.xlu0 %v440
        %v458 = vpop.xlane.xlu0 %457
        %459 = vadd.xlane.f32.xlu0 %v441
        %v460 = vpop.xlane.xlu0 %459
        %461 = vadd.xlane.f32.xlu0 %v442
        %v462 = vpop.xlane.xlu0 %461
        %463 = vadd.xlane.f32.xlu0 %v443
        %v464 = vpop.xlane.xlu0 %463
        %465 = vadd.xlane.f32.xlu0 %v444
        %v466 = vpop.xlane.xlu0 %465
        %467 = vadd.xlane.f32.xlu0 %v445
        %v468 = vpop.xlane.xlu0 %467
        %469 = vadd.xlane.f32.xlu0 %v446
        %v470 = vpop.xlane.xlu0 %469
        %471 = vadd.xlane.f32.xlu0 %v447
        %v472 = vpop.xlane.xlu0 %471
        %473 = vadd.xlane.f32.xlu0 %v448
        %v474 = vpop.xlane.xlu0 %473
        %475 = vadd.xlane.f32.xlu0 %v449
        %v476 = vpop.xlane.xlu0 %475
        %477 = vadd.xlane.f32.xlu0 %v450
        %v478 = vpop.xlane.xlu0 %477
        %479 = vadd.xlane.f32.xlu0 %v451
        %v480 = vpop.xlane.xlu0 %479
        %481 = vadd.xlane.f32.xlu0 %v452
        %v482 = vpop.xlane.xlu0 %481
        %483 = vadd.xlane.f32.xlu0 %v453
        %v484 = vpop.xlane.xlu0 %483
        %485 = vadd.xlane.f32.xlu0 %v454
        %v486 = vpop.xlane.xlu0 %485
        %v487 = vmul.f32 %v456, %v406
        %v488 = vmul.f32 %v458, %v406
        %v489 = vmul.f32 %v460, %v406
        %v490 = vmul.f32 %v462, %v406
        %v491 = vmul.f32 %v464, %v406
        %v492 = vmul.f32 %v466, %v406
        %v493 = vmul.f32 %v468, %v406
        %v494 = vmul.f32 %v470, %v406
        %v495 = vmul.f32 %v472, %v406
        %v496 = vmul.f32 %v474, %v406
        %v497 = vmul.f32 %v476, %v406
        %v498 = vmul.f32 %v478, %v406
        %v499 = vmul.f32 %v480, %v406
        %v500 = vmul.f32 %v482, %v406
        %v501 = vmul.f32 %v484, %v406
        %v502 = vmul.f32 %v486, %v406
        %v503 = vadd.f32 %v487, 1e-05
        %v504 = vadd.f32 %v488, 1e-05
        %v505 = vadd.f32 %v489, 1e-05
        %v506 = vadd.f32 %v490, 1e-05
        %v507 = vadd.f32 %v491, 1e-05
        %v508 = vadd.f32 %v492, 1e-05
        %v509 = vadd.f32 %v493, 1e-05
        %v510 = vadd.f32 %v494, 1e-05
        %v511 = vadd.f32 %v495, 1e-05
        %v512 = vadd.f32 %v496, 1e-05
        %v513 = vadd.f32 %v497, 1e-05
        %v514 = vadd.f32 %v498, 1e-05
        %v515 = vadd.f32 %v499, 1e-05
        %v516 = vadd.f32 %v500, 1e-05
        %v517 = vadd.f32 %v501, 1e-05
        %v518 = vadd.f32 %v502, 1e-05
        %v519 = vrsqrt.pop %v503
        %v520 = vrsqrt.pop %v504
        %v521 = vrsqrt.pop %v505
        %v522 = vrsqrt.pop %v506
        %v523 = vrsqrt.pop %v507
        %v524 = vrsqrt.pop %v508
        %v525 = vrsqrt.pop %v509
        %v526 = vrsqrt.pop %v510
        %v527 = vrsqrt.pop %v511
        %v528 = vrsqrt.pop %v512
        %v529 = vrsqrt.pop %v513
        %v530 = vrsqrt.pop %v514
        %v531 = vrsqrt.pop %v515
        %v532 = vrsqrt.pop %v516
        %v533 = vrsqrt.pop %v517
        %v534 = vrsqrt.pop %v518
        %v535 = vmul.f32 %v423, %v519
        %v536 = vmul.f32 %v424, %v520
        %v537 = vmul.f32 %v425, %v521
        %v538 = vmul.f32 %v426, %v522
        %v539 = vmul.f32 %v427, %v523
        %v540 = vmul.f32 %v428, %v524
        %v541 = vmul.f32 %v429, %v525
        %v542 = vmul.f32 %v430, %v526
        %v543 = vmul.f32 %v431, %v527
        %v544 = vmul.f32 %v432, %v528
        %v545 = vmul.f32 %v433, %v529
        %v546 = vmul.f32 %v434, %v530
        %v547 = vmul.f32 %v435, %v531
        %v548 = vmul.f32 %v436, %v532
        %v549 = vmul.f32 %v437, %v533
        %v550 = vmul.f32 %v438, %v534
        %v552 = vlaneseq
        %v553 = vshrl.u32 %v552, 7
        %v554 = vsub.s32 0, %v553
        %v555 = vrot.slane %v372, %v554
        %v557 = vmul.f32 %v535, %v555
        %v558 = vmul.f32 %v536, %v555
        %v559 = vmul.f32 %v537, %v555
        %v560 = vmul.f32 %v538, %v555
        %v561 = vmul.f32 %v539, %v555
        %v562 = vmul.f32 %v540, %v555
        %v563 = vmul.f32 %v541, %v555
        %v564 = vmul.f32 %v542, %v555
        %v565 = vmul.f32 %v543, %v555
        %v566 = vmul.f32 %v544, %v555
        %v567 = vmul.f32 %v545, %v555
        %v568 = vmul.f32 %v546, %v555
        %v569 = vmul.f32 %v547, %v555
        %v570 = vmul.f32 %v548, %v555
        %v571 = vmul.f32 %v549, %v555
        %v572 = vmul.f32 %v550, %v555
        %v574 = vlaneseq
        %v575 = vshrl.u32 %v574, 7
        %v576 = vsub.s32 0, %v575
        %v577 = vrot.slane %v373, %v576
        %v579 = vadd.f32 %v557, %v577
        %v580 = vadd.f32 %v558, %v577
        %v581 = vadd.f32 %v559, %v577
        %v582 = vadd.f32 %v560, %v577
        %v583 = vadd.f32 %v561, %v577
        %v584 = vadd.f32 %v562, %v577
        %v585 = vadd.f32 %v563, %v577
        %v586 = vadd.f32 %v564, %v577
        %v587 = vadd.f32 %v565, %v577
        %v588 = vadd.f32 %v566, %v577
        %v589 = vadd.f32 %v567, %v577
        %v590 = vadd.f32 %v568, %v577
        %v591 = vadd.f32 %v569, %v577
        %v592 = vadd.f32 %v570, %v577
        %v593 = vadd.f32 %v571, %v577
        %v594 = vadd.f32 %v572, %v577
        %v595 = vld [vmem:[#allocation5] sm:$0xff]
        %v596 = vld [vmem:[#allocation5 + $0x8] sm:$0xff]
        %v597 = vld [vmem:[#allocation5 + $0x10] sm:$0xff]
        %v598 = vld [vmem:[#allocation5 + $0x18] sm:$0xff]
        %v599 = vld [vmem:[#allocation5 + $0x20] sm:$0xff]
        %v600 = vld [vmem:[#allocation5 + $0x28] sm:$0xff]
        %v601 = vld [vmem:[#allocation5 + $0x30] sm:$0xff]
        %v602 = vld [vmem:[#allocation5 + $0x38] sm:$0xff]
        %v603 = vld [vmem:[#allocation5 + $0x40] sm:$0xff]
        %v604 = vld [vmem:[#allocation5 + $0x48] sm:$0xff]
        %v605 = vld [vmem:[#allocation5 + $0x50] sm:$0xff]
        %v606 = vld [vmem:[#allocation5 + $0x58] sm:$0xff]
        %v607 = vld [vmem:[#allocation5 + $0x60] sm:$0xff]
        %v608 = vld [vmem:[#allocation5 + $0x68] sm:$0xff]
        %v609 = vld [vmem:[#allocation5 + $0x70] sm:$0xff]
        %v610 = vld [vmem:[#allocation5 + $0x78] sm:$0xff]
        %v611 = vld [vmem:[#allocation5 + $0x80] sm:$0xff]
        %v612 = vld [vmem:[#allocation5 + $0x88] sm:$0xff]
        %v613 = vld [vmem:[#allocation5 + $0x90] sm:$0xff]
        %v614 = vld [vmem:[#allocation5 + $0x98] sm:$0xff]
        %v615 = vld [vmem:[#allocation5 + $0xa0] sm:$0xff]
        %v616 = vld [vmem:[#allocation5 + $0xa8] sm:$0xff]
        %v617 = vld [vmem:[#allocation5 + $0xb0] sm:$0xff]
        %v618 = vld [vmem:[#allocation5 + $0xb8] sm:$0xff]
        %v619 = vld [vmem:[#allocation5 + $0xc0] sm:$0xff]
        %v620 = vld [vmem:[#allocation5 + $0xc8] sm:$0xff]
        %v621 = vld [vmem:[#allocation5 + $0xd0] sm:$0xff]
        %v622 = vld [vmem:[#allocation5 + $0xd8] sm:$0xff]
        %v623 = vld [vmem:[#allocation5 + $0xe0] sm:$0xff]
        %v624 = vld [vmem:[#allocation5 + $0xe8] sm:$0xff]
        %v625 = vld [vmem:[#allocation5 + $0xf0] sm:$0xff]
        %v626 = vld [vmem:[#allocation5 + $0xf8] sm:$0xff]
        %v627 = vld [vmem:[#allocation5 + $0x100] sm:$0xff]
        %v628 = vld [vmem:[#allocation5 + $0x108] sm:$0xff]
        %v629 = vld [vmem:[#allocation5 + $0x110] sm:$0xff]
        %v630 = vld [vmem:[#allocation5 + $0x118] sm:$0xff]
        %v631 = vld [vmem:[#allocation5 + $0x120] sm:$0xff]
        %v632 = vld [vmem:[#allocation5 + $0x128] sm:$0xff]
        %v633 = vld [vmem:[#allocation5 + $0x130] sm:$0xff]
        %v634 = vld [vmem:[#allocation5 + $0x138] sm:$0xff]
        %v635 = vld [vmem:[#allocation5 + $0x140] sm:$0xff]
        %v636 = vld [vmem:[#allocation5 + $0x148] sm:$0xff]
        %v637 = vld [vmem:[#allocation5 + $0x150] sm:$0xff]
        %v638 = vld [vmem:[#allocation5 + $0x158] sm:$0xff]
        %v639 = vld [vmem:[#allocation5 + $0x160] sm:$0xff]
        %v640 = vld [vmem:[#allocation5 + $0x168] sm:$0xff]
        %v641 = vld [vmem:[#allocation5 + $0x170] sm:$0xff]
        %v642 = vld [vmem:[#allocation5 + $0x178] sm:$0xff]
        %v643 = vld [vmem:[%s4] sm:$0x7]
        %v645 = vlaneseq
        %v646 = vshrl.u32 %v645, 7
        %v647 = vsub.s32 0, %v646
        %v648 = vrot.slane %v643, %v647
        %v649 = vlaneseq
        %v650 = vshrl.u32 %v649, 7
        %v651 = vsub.s32 1, %v650
        %v652 = vrot.slane %v643, %v651
        %v653 = vlaneseq
        %v654 = vshrl.u32 %v653, 7
        %v655 = vsub.s32 2, %v654
        %v656 = vrot.slane %v643, %v655
        %660 = vmatprep.subr.mxu0 %v641
        %661 = vmatpush1.msra.mxu0 %v640
        %662 = vmatprep.subr.mxu0 %v638
        %663 = vmatpush1.msra.mxu0 %v637
        %664 = vmatprep.subr.mxu0 %v635
        %665 = vmatpush1.msra.mxu0 %v634
        %666 = vmatprep.subr.mxu0 %v632
        %667 = vmatpush1.msra.mxu0 %v631
        %668 = vmatprep.subr.mxu0 %v629
        %669 = vmatpush1.msra.mxu0 %v628
        %670 = vmatprep.subr.mxu0 %v626
        %671 = vmatpush1.msra.mxu0 %v625
        %672 = vmatprep.subr.mxu0 %v623
        %673 = vmatpush1.msra.mxu0 %v622
        %674 = vmatprep.subr.mxu0 %v620
        %675 = vmatpush1.msra.mxu0 %v619
        %676 = vmatprep.subr.mxu0 %v617
        %677 = vmatpush1.msra.mxu0 %v616
        %678 = vmatprep.subr.mxu0 %v614
        %679 = vmatpush1.msra.mxu0 %v613
        %680 = vmatprep.subr.mxu0 %v611
        %681 = vmatpush1.msra.mxu0 %v610
        %682 = vmatprep.subr.mxu0 %v608
        %683 = vmatpush1.msra.mxu0 %v607
        %684 = vmatprep.subr.mxu0 %v605
        %685 = vmatpush1.msra.mxu0 %v604
        %686 = vmatprep.subr.mxu0 %v602
        %687 = vmatpush1.msra.mxu0 %v601
        %688 = vmatprep.subr.mxu0 %v599
        %689 = vmatpush1.msra.mxu0 %v598
        %690 = vmatprep.subr.mxu0 %v596
        %691 = vmatpush1.msra.mxu0 %v595
        %692 = vmatprep.subr.mxu0 0.0
        %693 = vmatpush2.msra.mxu0 0.0
        %694 = vmatprep.subr.mxu0 0.0
        %695 = vmatpush2.msra.mxu0 0.0
        %696 = vmatprep.subr.mxu0 0.0
        %697 = vmatpush2.msra.mxu0 0.0
        %698 = vmatprep.subr.mxu0 0.0
        %699 = vmatpush2.msra.mxu0 0.0
        %700 = vmatprep.subr.mxu0 0.0
        %701 = vmatpush2.msra.mxu0 0.0
        %702 = vmatprep.subr.mxu0 0.0
        %703 = vmatpush2.msra.mxu0 0.0
        %704 = vmatprep.subr.mxu0 0.0
        %705 = vmatpush2.msra.mxu0 0.0
        %706 = vmatprep.subr.mxu0 0.0
        %707 = vmatpush2.msra.mxu0 0.0
        %708 = vmatprep.subr.mxu0 0.0
        %709 = vmatpush2.msra.mxu0 0.0
        %710 = vmatprep.subr.mxu0 0.0
        %711 = vmatpush2.msra.mxu0 0.0
        %712 = vmatprep.subr.mxu0 0.0
        %713 = vmatpush2.msra.mxu0 0.0
        %714 = vmatprep.subr.mxu0 0.0
        %715 = vmatpush2.msra.mxu0 0.0
        %716 = vmatprep.subr.mxu0 0.0
        %717 = vmatpush2.msra.mxu0 0.0
        %718 = vmatprep.subr.mxu0 0.0
        %719 = vmatpush2.msra.mxu0 0.0
        %720 = vmatprep.subr.mxu0 0.0
        %721 = vmatpush2.msra.mxu0 0.0
        %722 = vmatprep.subr.mxu0 0.0
        %723 = vmatpush2.msra.mxu0 0.0
        %724 = vmatprep.mubr.f32.mxu0 0.0
        %725 = vmatmul.mubr.f32.gmra.mxu0 %v579
        %v726 = vpop.f32.mrf.mxu0
        %v727 = vadd.f32 %v648, %v726
        %v728 = vpop.f32.mrf.mxu0
        %v729 = vadd.f32 %v652, %v728
        %730 = vmatprep.mubr.f32.mxu0 0.0
        %731 = vmatmul.mubr.f32.gmra.mxu0 %v580
        %v732 = vpop.f32.mrf.mxu0
        %v733 = vadd.f32 %v648, %v732
        %v734 = vpop.f32.mrf.mxu0
        %v735 = vadd.f32 %v652, %v734
        %736 = vmatprep.mubr.f32.mxu0 0.0
        %737 = vmatmul.mubr.f32.gmra.mxu0 %v581
        %v738 = vpop.f32.mrf.mxu0
        %v739 = vadd.f32 %v648, %v738
        %v740 = vpop.f32.mrf.mxu0
        %v741 = vadd.f32 %v652, %v740
        %742 = vmatprep.mubr.f32.mxu0 0.0
        %743 = vmatmul.mubr.f32.gmra.mxu0 %v582
        %v744 = vpop.f32.mrf.mxu0
        %v745 = vadd.f32 %v648, %v744
        %v746 = vpop.f32.mrf.mxu0
        %v747 = vadd.f32 %v652, %v746
        %748 = vmatprep.mubr.f32.mxu0 0.0
        %749 = vmatmul.mubr.f32.gmra.mxu0 %v583
        %v750 = vpop.f32.mrf.mxu0
        %v751 = vadd.f32 %v648, %v750
        %v752 = vpop.f32.mrf.mxu0
        %v753 = vadd.f32 %v652, %v752
        %754 = vmatprep.mubr.f32.mxu0 0.0
        %755 = vmatmul.mubr.f32.gmra.mxu0 %v584
        %v756 = vpop.f32.mrf.mxu0
        %v757 = vadd.f32 %v648, %v756
        %v758 = vpop.f32.mrf.mxu0
        %v759 = vadd.f32 %v652, %v758
        %760 = vmatprep.mubr.f32.mxu0 0.0
        %761 = vmatmul.mubr.f32.gmra.mxu0 %v585
        %v762 = vpop.f32.mrf.mxu0
        %v763 = vadd.f32 %v648, %v762
        %v764 = vpop.f32.mrf.mxu0
        %v765 = vadd.f32 %v652, %v764
        %766 = vmatprep.mubr.f32.mxu0 0.0
        %767 = vmatmul.mubr.f32.gmra.mxu0 %v586
        %v768 = vpop.f32.mrf.mxu0
        %v769 = vadd.f32 %v648, %v768
        %v770 = vpop.f32.mrf.mxu0
        %v771 = vadd.f32 %v652, %v770
        %772 = vmatprep.mubr.f32.mxu0 0.0
        %773 = vmatmul.mubr.f32.gmra.mxu0 %v587
        %v774 = vpop.f32.mrf.mxu0
        %v775 = vadd.f32 %v648, %v774
        %v776 = vpop.f32.mrf.mxu0
        %v777 = vadd.f32 %v652, %v776
        %778 = vmatprep.mubr.f32.mxu0 0.0
        %779 = vmatmul.mubr.f32.gmra.mxu0 %v588
        %v780 = vpop.f32.mrf.mxu0
        %v781 = vadd.f32 %v648, %v780
        %v782 = vpop.f32.mrf.mxu0
        %v783 = vadd.f32 %v652, %v782
        %784 = vmatprep.mubr.f32.mxu0 0.0
        %785 = vmatmul.mubr.f32.gmra.mxu0 %v589
        %v786 = vpop.f32.mrf.mxu0
        %v787 = vadd.f32 %v648, %v786
        %v788 = vpop.f32.mrf.mxu0
        %v789 = vadd.f32 %v652, %v788
        %790 = vmatprep.mubr.f32.mxu0 0.0
        %791 = vmatmul.mubr.f32.gmra.mxu0 %v590
        %v792 = vpop.f32.mrf.mxu0
        %v793 = vadd.f32 %v648, %v792
        %v794 = vpop.f32.mrf.mxu0
        %v795 = vadd.f32 %v652, %v794
        %796 = vmatprep.mubr.f32.mxu0 0.0
        %797 = vmatmul.mubr.f32.gmra.mxu0 %v591
        %v798 = vpop.f32.mrf.mxu0
        %v799 = vadd.f32 %v648, %v798
        %v800 = vpop.f32.mrf.mxu0
        %v801 = vadd.f32 %v652, %v800
        %802 = vmatprep.mubr.f32.mxu0 0.0
        %803 = vmatmul.mubr.f32.gmra.mxu0 %v592
        %v804 = vpop.f32.mrf.mxu0
        %v805 = vadd.f32 %v648, %v804
        %v806 = vpop.f32.mrf.mxu0
        %v807 = vadd.f32 %v652, %v806
        %808 = vmatprep.mubr.f32.mxu0 0.0
        %809 = vmatmul.mubr.f32.gmra.mxu0 %v593
        %v810 = vpop.f32.mrf.mxu0
        %v811 = vadd.f32 %v648, %v810
        %v812 = vpop.f32.mrf.mxu0
        %v813 = vadd.f32 %v652, %v812
        %814 = vmatprep.mubr.f32.mxu0 0.0
        %815 = vmatmul.mubr.f32.gmra.mxu0 %v594
        %v816 = vpop.f32.mrf.mxu0
        %v817 = vadd.f32 %v648, %v816
        %v818 = vpop.f32.mrf.mxu0
        %v819 = vadd.f32 %v652, %v818
        %820 = vdwg.mxu0
        %821 = vmatprep.subr.mxu0 0.0
        %822 = vmatpush1.msra.mxu0 %v642
        %823 = vmatprep.subr.mxu0 0.0
        %824 = vmatpush1.msra.mxu0 %v639
        %825 = vmatprep.subr.mxu0 0.0
        %826 = vmatpush1.msra.mxu0 %v636
        %827 = vmatprep.subr.mxu0 0.0
        %828 = vmatpush1.msra.mxu0 %v633
        %829 = vmatprep.subr.mxu0 0.0
        %830 = vmatpush1.msra.mxu0 %v630
        %831 = vmatprep.subr.mxu0 0.0
        %832 = vmatpush1.msra.mxu0 %v627
        %833 = vmatprep.subr.mxu0 0.0
        %834 = vmatpush1.msra.mxu0 %v624
        %835 = vmatprep.subr.mxu0 0.0
        %836 = vmatpush1.msra.mxu0 %v621
        %837 = vmatprep.subr.mxu0 0.0
        %838 = vmatpush1.msra.mxu0 %v618
        %839 = vmatprep.subr.mxu0 0.0
        %840 = vmatpush1.msra.mxu0 %v615
        %841 = vmatprep.subr.mxu0 0.0
        %842 = vmatpush1.msra.mxu0 %v612
        %843 = vmatprep.subr.mxu0 0.0
        %844 = vmatpush1.msra.mxu0 %v609
        %845 = vmatprep.subr.mxu0 0.0
        %846 = vmatpush1.msra.mxu0 %v606
        %847 = vmatprep.subr.mxu0 0.0
        %848 = vmatpush1.msra.mxu0 %v603
        %849 = vmatprep.subr.mxu0 0.0
        %850 = vmatpush1.msra.mxu0 %v600
        %851 = vmatprep.subr.mxu0 0.0
        %852 = vmatpush1.msra.mxu0 %v597
        %853 = vmatprep.subr.mxu0 0.0
        %854 = vmatpush2.msra.mxu0 0.0
        %855 = vmatprep.subr.mxu0 0.0
        %856 = vmatpush2.msra.mxu0 0.0
        %857 = vmatprep.subr.mxu0 0.0
        %858 = vmatpush2.msra.mxu0 0.0
        %859 = vmatprep.subr.mxu0 0.0
        %860 = vmatpush2.msra.mxu0 0.0
        %861 = vmatprep.subr.mxu0 0.0
        %862 = vmatpush2.msra.mxu0 0.0
        %863 = vmatprep.subr.mxu0 0.0
        %864 = vmatpush2.msra.mxu0 0.0
        %865 = vmatprep.subr.mxu0 0.0
        %866 = vmatpush2.msra.mxu0 0.0
        %867 = vmatprep.subr.mxu0 0.0
        %868 = vmatpush2.msra.mxu0 0.0
        %869 = vmatprep.subr.mxu0 0.0
        %870 = vmatpush2.msra.mxu0 0.0
        %871 = vmatprep.subr.mxu0 0.0
        %872 = vmatpush2.msra.mxu0 0.0
        %873 = vmatprep.subr.mxu0 0.0
        %874 = vmatpush2.msra.mxu0 0.0
        %875 = vmatprep.subr.mxu0 0.0
        %876 = vmatpush2.msra.mxu0 0.0
        %877 = vmatprep.subr.mxu0 0.0
        %878 = vmatpush2.msra.mxu0 0.0
        %879 = vmatprep.subr.mxu0 0.0
        %880 = vmatpush2.msra.mxu0 0.0
        %881 = vmatprep.subr.mxu0 0.0
        %882 = vmatpush2.msra.mxu0 0.0
        %883 = vmatprep.subr.mxu0 0.0
        %884 = vmatpush2.msra.mxu0 0.0
        %885 = vmatprep.mubr.f32.mxu0 0.0
        %886 = vmatmul.mubr.f32.gmra.mxu0 %v579
        %v887 = vpop.f32.mrf.mxu0
        %v888 = vadd.f32 %v656, %v887
        %v889 = vpop.f32.mrf.mxu0
        %890 = vmatprep.mubr.f32.mxu0 0.0
        %891 = vmatmul.mubr.f32.gmra.mxu0 %v580
        %v892 = vpop.f32.mrf.mxu0
        %v893 = vadd.f32 %v656, %v892
        %v894 = vpop.f32.mrf.mxu0
        %895 = vmatprep.mubr.f32.mxu0 0.0
        %896 = vmatmul.mubr.f32.gmra.mxu0 %v581
        %v897 = vpop.f32.mrf.mxu0
        %v898 = vadd.f32 %v656, %v897
        %v899 = vpop.f32.mrf.mxu0
        %900 = vmatprep.mubr.f32.mxu0 0.0
        %901 = vmatmul.mubr.f32.gmra.mxu0 %v582
        %v902 = vpop.f32.mrf.mxu0
        %v903 = vadd.f32 %v656, %v902
        %v904 = vpop.f32.mrf.mxu0
        %905 = vmatprep.mubr.f32.mxu0 0.0
        %906 = vmatmul.mubr.f32.gmra.mxu0 %v583
        %v907 = vpop.f32.mrf.mxu0
        %v908 = vadd.f32 %v656, %v907
        %v909 = vpop.f32.mrf.mxu0
        %910 = vmatprep.mubr.f32.mxu0 0.0
        %911 = vmatmul.mubr.f32.gmra.mxu0 %v584
        %v912 = vpop.f32.mrf.mxu0
        %v913 = vadd.f32 %v656, %v912
        %v914 = vpop.f32.mrf.mxu0
        %915 = vmatprep.mubr.f32.mxu0 0.0
        %916 = vmatmul.mubr.f32.gmra.mxu0 %v585
        %v917 = vpop.f32.mrf.mxu0
        %v918 = vadd.f32 %v656, %v917
        %v919 = vpop.f32.mrf.mxu0
        %920 = vmatprep.mubr.f32.mxu0 0.0
        %921 = vmatmul.mubr.f32.gmra.mxu0 %v586
        %v922 = vpop.f32.mrf.mxu0
        %v923 = vadd.f32 %v656, %v922
        %v924 = vpop.f32.mrf.mxu0
        %925 = vmatprep.mubr.f32.mxu0 0.0
        %926 = vmatmul.mubr.f32.gmra.mxu0 %v587
        %v927 = vpop.f32.mrf.mxu0
        %v928 = vadd.f32 %v656, %v927
        %v929 = vpop.f32.mrf.mxu0
        %930 = vmatprep.mubr.f32.mxu0 0.0
        %931 = vmatmul.mubr.f32.gmra.mxu0 %v588
        %v932 = vpop.f32.mrf.mxu0
        %v933 = vadd.f32 %v656, %v932
        %v934 = vpop.f32.mrf.mxu0
        %935 = vmatprep.mubr.f32.mxu0 0.0
        %936 = vmatmul.mubr.f32.gmra.mxu0 %v589
        %v937 = vpop.f32.mrf.mxu0
        %v938 = vadd.f32 %v656, %v937
        %v939 = vpop.f32.mrf.mxu0
        %940 = vmatprep.mubr.f32.mxu0 0.0
        %941 = vmatmul.mubr.f32.gmra.mxu0 %v590
        %v942 = vpop.f32.mrf.mxu0
        %v943 = vadd.f32 %v656, %v942
        %v944 = vpop.f32.mrf.mxu0
        %945 = vmatprep.mubr.f32.mxu0 0.0
        %946 = vmatmul.mubr.f32.gmra.mxu0 %v591
        %v947 = vpop.f32.mrf.mxu0
        %v948 = vadd.f32 %v656, %v947
        %v949 = vpop.f32.mrf.mxu0
        %950 = vmatprep.mubr.f32.mxu0 0.0
        %951 = vmatmul.mubr.f32.gmra.mxu0 %v592
        %v952 = vpop.f32.mrf.mxu0
        %v953 = vadd.f32 %v656, %v952
        %v954 = vpop.f32.mrf.mxu0
        %955 = vmatprep.mubr.f32.mxu0 0.0
        %956 = vmatmul.mubr.f32.gmra.mxu0 %v593
        %v957 = vpop.f32.mrf.mxu0
        %v958 = vadd.f32 %v656, %v957
        %v959 = vpop.f32.mrf.mxu0
        %960 = vmatprep.mubr.f32.mxu0 0.0
        %961 = vmatmul.mubr.f32.gmra.mxu0 %v594
        %v962 = vpop.f32.mrf.mxu0
        %v963 = vadd.f32 %v656, %v962
        %v964 = vpop.f32.mrf.mxu0
        %965 = vdwg.mxu0
        %966 = vst [vmem:[%s337] sm:$0xff] %v727
        %967 = vst [vmem:[%s337 + $0x8] sm:$0xff] %v733
        %968 = vst [vmem:[%s337 + $0x10] sm:$0xff] %v739
        %969 = vst [vmem:[%s337 + $0x18] sm:$0xff] %v745
        %970 = vst [vmem:[%s337 + $0x20] sm:$0xff] %v751
        %971 = vst [vmem:[%s337 + $0x28] sm:$0xff] %v757
        %972 = vst [vmem:[%s337 + $0x30] sm:$0xff] %v763
        %973 = vst [vmem:[%s337 + $0x38] sm:$0xff] %v769
        %974 = vst [vmem:[%s337 + $0x40] sm:$0xff] %v775
        %975 = vst [vmem:[%s337 + $0x48] sm:$0xff] %v781
        %976 = vst [vmem:[%s337 + $0x50] sm:$0xff] %v787
        %977 = vst [vmem:[%s337 + $0x58] sm:$0xff] %v793
        %978 = vst [vmem:[%s337 + $0x60] sm:$0xff] %v799
        %979 = vst [vmem:[%s337 + $0x68] sm:$0xff] %v805
        %980 = vst [vmem:[%s337 + $0x70] sm:$0xff] %v811
        %981 = vst [vmem:[%s337 + $0x78] sm:$0xff] %v817
        %982 = vst [vmem:[%s344] sm:$0xff] %v729
        %983 = vst [vmem:[%s344 + $0x8] sm:$0xff] %v735
        %984 = vst [vmem:[%s344 + $0x10] sm:$0xff] %v741
        %985 = vst [vmem:[%s344 + $0x18] sm:$0xff] %v747
        %986 = vst [vmem:[%s344 + $0x20] sm:$0xff] %v753
        %987 = vst [vmem:[%s344 + $0x28] sm:$0xff] %v759
        %988 = vst [vmem:[%s344 + $0x30] sm:$0xff] %v765
        %989 = vst [vmem:[%s344 + $0x38] sm:$0xff] %v771
        %990 = vst [vmem:[%s344 + $0x40] sm:$0xff] %v777
        %991 = vst [vmem:[%s344 + $0x48] sm:$0xff] %v783
        %992 = vst [vmem:[%s344 + $0x50] sm:$0xff] %v789
        %993 = vst [vmem:[%s344 + $0x58] sm:$0xff] %v795
        %994 = vst [vmem:[%s344 + $0x60] sm:$0xff] %v801
        %995 = vst [vmem:[%s344 + $0x68] sm:$0xff] %v807
        %996 = vst [vmem:[%s344 + $0x70] sm:$0xff] %v813
        %997 = vst [vmem:[%s344 + $0x78] sm:$0xff] %v819
        %998 = vst [vmem:[%s351] sm:$0xff] %v888
        %999 = vst [vmem:[%s351 + $0x8] sm:$0xff] %v893
        %1000 = vst [vmem:[%s351 + $0x10] sm:$0xff] %v898
        %1001 = vst [vmem:[%s351 + $0x18] sm:$0xff] %v903
        %1002 = vst [vmem:[%s351 + $0x20] sm:$0xff] %v908
        %1003 = vst [vmem:[%s351 + $0x28] sm:$0xff] %v913
        %1004 = vst [vmem:[%s351 + $0x30] sm:$0xff] %v918
        %1005 = vst [vmem:[%s351 + $0x38] sm:$0xff] %v923
        %1006 = vst [vmem:[%s351 + $0x40] sm:$0xff] %v928
        %1007 = vst [vmem:[%s351 + $0x48] sm:$0xff] %v933
        %1008 = vst [vmem:[%s351 + $0x50] sm:$0xff] %v938
        %1009 = vst [vmem:[%s351 + $0x58] sm:$0xff] %v943
        %1010 = vst [vmem:[%s351 + $0x60] sm:$0xff] %v948
        %1011 = vst [vmem:[%s351 + $0x68] sm:$0xff] %v953
        %1012 = vst [vmem:[%s351 + $0x70] sm:$0xff] %v958
        %1013 = vst [vmem:[%s351 + $0x78] sm:$0xff] %v963
        %s1014 = sand.u32 %s163, 1
        %s1015 = scalar_lea.sflag [#allocation4], %s1014
        %s1016 = sand.u32 %s163, 1
        %s1017 = smul.addr %s1016, 128
        %s1018 = scalar_lea.vmem [#allocation7], %s1017
        %s1019 = sand.u32 %s29, 1
        %s1020 = scalar_lea.sflag [#allocation9], %s1019
        %s1021 = sand.u32 %s191, 1
        %s1022 = smul.addr %s1021, 128
        %s1023 = scalar_lea.vmem [#allocation8], %s1022
        %s1024 = sand.u32 %s29, 1
        %s1025 = scalar_lea.sflag [#allocation9], %s1024
        %s1026 = sand.u32 %s219, 1
        %s1027 = smul.addr %s1026, 128
        %s1028 = scalar_lea.vmem [#allocation10], %s1027
        // Predicated region
        $region49: #{tpu_custom_call.1} parent=39 // pred_check
          %p1029 = pneg %p173
        $region50: #{tpu_custom_call.1} parent=39 // pred_check_branch
          %1031 = sbr.rel (%p1029) target = $region52
        $region51: #{tpu_custom_call.1} parent=39 // pred_region
          %s1032 = smul.u32 16, %s34
          %s1034 = ssub.s32 2048, 2048
          %1035 = vsyncadd %s1015, %s1034
          %s1036 = smul.addr %s33, 32
          %s1037 = sadd.s32 %s1032, %s1036
          %s1038 = smul.addr %s1037, 128
          %s1039 = scalar_lea.hbm %s5, %s1038
          %s1040 = sshll.u32 %s1018, 4
          %s1041 = int_to_ptr.vmem [resolvable:$true] %s1040
          %1046 = dma.vmem_to_hbm [thread:$0]  %s1041, 2048, %s1039, %s1015, 128, 128, 8
        $region52: #{tpu_custom_call.1} parent=39 // pred_fallthru
          _
        // Predicated region
        $region53: #{tpu_custom_call.1} parent=39 // pred_check
          %p1047 = pneg %p201
        $region54: #{tpu_custom_call.1} parent=39 // pred_check_branch
          %1049 = sbr.rel (%p1047) target = $region56
        $region55: #{tpu_custom_call.1} parent=39 // pred_region
          %s1050 = smul.u32 16, %s34
          %s1052 = ssub.s32 2048, 2048
          %1053 = vsyncadd %s1020, %s1052
          %s1054 = smul.addr %s33, 32
          %s1055 = sadd.s32 %s1050, %s1054
          %s1056 = smul.addr %s1055, 128
          %s1057 = scalar_lea.hbm %s6, %s1056
          %s1058 = sshll.u32 %s1023, 4
          %s1059 = int_to_ptr.vmem [resolvable:$true] %s1058
          %1064 = dma.vmem_to_hbm [thread:$0]  %s1059, 2048, %s1057, %s1020, 128, 128, 8
        $region56: #{tpu_custom_call.1} parent=39 // pred_fallthru
          _
        // Predicated region
        $region57: #{tpu_custom_call.1} parent=39 // pred_check
          %p1065 = pneg %p229
        $region58: #{tpu_custom_call.1} parent=39 // pred_check_branch
          %1067 = sbr.rel (%p1065) target = $region60
        $region59: #{tpu_custom_call.1} parent=39 // pred_region
          %s1068 = smul.u32 16, %s34
          %s1070 = ssub.s32 2048, 2048
          %1071 = vsyncadd %s1025, %s1070
          %s1072 = smul.addr %s33, 32
          %s1073 = sadd.s32 %s1068, %s1072
          %s1074 = smul.addr %s1073, 128
          %s1075 = scalar_lea.hbm %s7, %s1074
          %s1076 = sshll.u32 %s1028, 4
          %s1077 = int_to_ptr.vmem [resolvable:$true] %s1076
          %1082 = dma.vmem_to_hbm [thread:$0]  %s1077, 2048, %s1075, %s1025, 128, 128, 8
        $region60: #{tpu_custom_call.1} parent=39 // pred_fallthru
          _
      $region40: #{tpu_custom_call.1} parent=5 // pred_fallthru
        _
      %p1083 = scmp.le.s32.totalorder 2, %s24
      // Predicated region
      $region61: #{tpu_custom_call.1} parent=5 // pred_check
        %p1084 = pneg %p1083
      $region62: #{tpu_custom_call.1} parent=5 // pred_check_branch
        %1086 = sbr.rel (%p1084) target = $region64
      $region63: #{tpu_custom_call.1} parent=5 // pred_region
        %s1087 = ssub.s32 %s24, 2
        // Predicated region
        $region65: #{tpu_custom_call.1} parent=63 // pred_check
          %p1088 = pneg %p179
        $region66: #{tpu_custom_call.1} parent=63 // pred_check_branch
          %1090 = sbr.rel (%p1088) target = $region68
        $region67: #{tpu_custom_call.1} parent=63 // pred_region
          %s1091 = sand.u32 %s164, 1
          %s1092 = scalar_lea.sflag [#allocation4], %s1091
          %s1093 = sand.u32 %s164, 1
          %s1094 = smul.addr %s1093, 128
          %s1095 = scalar_lea.vmem [#allocation7], %s1094
          %1096 = dma.done %s1092, 2048
        $region68: #{tpu_custom_call.1} parent=63 // pred_fallthru
          _
        // Predicated region
        $region69: #{tpu_custom_call.1} parent=63 // pred_check
          %p1097 = pneg %p207
        $region70: #{tpu_custom_call.1} parent=63 // pred_check_branch
          %1099 = sbr.rel (%p1097) target = $region72
        $region71: #{tpu_custom_call.1} parent=63 // pred_region
          %s1100 = sand.u32 %s30, 1
          %s1101 = scalar_lea.sflag [#allocation9], %s1100
          %s1102 = sand.u32 %s192, 1
          %s1103 = smul.addr %s1102, 128
          %s1104 = scalar_lea.vmem [#allocation8], %s1103
          %1105 = dma.done %s1101, 2048
        $region72: #{tpu_custom_call.1} parent=63 // pred_fallthru
          _
        // Predicated region
        $region73: #{tpu_custom_call.1} parent=63 // pred_check
          %p1106 = pneg %p235
        $region74: #{tpu_custom_call.1} parent=63 // pred_check_branch
          %1108 = sbr.rel (%p1106) target = $region76
        $region75: #{tpu_custom_call.1} parent=63 // pred_region
          %s1109 = sand.u32 %s30, 1
          %s1110 = scalar_lea.sflag [#allocation9], %s1109
          %s1111 = sand.u32 %s220, 1
          %s1112 = smul.addr %s1111, 128
          %s1113 = scalar_lea.vmem [#allocation10], %s1112
          %1114 = dma.done %s1110, 2048
        $region76: #{tpu_custom_call.1} parent=63 // pred_fallthru
          _
      $region64: #{tpu_custom_call.1} parent=5 // pred_fallthru
        _
    $region6: #{tpu_custom_call.1} parent=1 // loop_footer
      %s28 = sadd.s32 1, %s24
    $region7: #{tpu_custom_call.1} parent=1 // loop_footer_branch
      %23 = sbr.rel target = $region3
    $region8: #{tpu_custom_call.1} parent=1 // loop_exit
      _
    %1115 = vsyncpa [#allocation3], 1
    %s1116 = scalar_lea.sflag [#allocation3], 1
    %1117 = vsyncpa %s1116, 1
    %1118 = vsyncpa [#allocation6], 1
    %1119 = vsyncpa [#allocation4], 1
    %s1120 = scalar_lea.sflag [#allocation4], 1
    %1121 = vsyncpa %s1120, 1
    %1122 = vsyncpa [#allocation9], 1
    %s1123 = scalar_lea.sflag [#allocation9], 1
    %1124 = vsyncpa %s1123, 1

</llo_original>
